<compile_context>
chip_gen: v5e
topology: v5e:2x2
jax: 0.10.0
libtpu: 0.0.40
codegen_flags: <defaults>
</compile_context>

<pallas_src>
import functools

import jax
import jax.numpy as jnp
from jax.experimental import pallas as pl
from jax.experimental.pallas import tpu as pltpu


LANE = 128
SUBLANE = 8


def _round_up(x, m):
    return (x + m - 1) // m * m


def _pick_chunk(T, target):
    tc = max(1, min(target, T))
    while T % tc:
        tc -= 1
    return tc


# ----------------------------------------------------------------------------
# Fused bidirectional GRU kernel.  Grid = (direction, time-chunk).
# ----------------------------------------------------------------------------
def _bigru_kernel(x_ref, h0_ref, wx_ref, b_ref, whzr_ref, whn_ref,   # inputs
                  out_ref, hT_ref,                                   # outputs
                  h_scr, xg_scr):                                    # scratch
    d = pl.program_id(0)          # 0 = forward, 1 = backward
    c = pl.program_id(1)          # time-chunk index (processing order)
    nc = pl.num_programs(1)

    Bp, Dp = h_scr.shape          # padded batch, padded hidden
    TcBp = xg_scr.shape[0]
    Tc = TcBp // Bp               # timesteps per chunk (static)

    @pl.when(c == 0)
    def _():
        h_scr[...] = h0_ref[...].astype(jnp.float32)

    # ---- hoisted input projection for the whole chunk: one wide MXU matmul ----
    # x chunk: (Tc*Bp, D_in) @ (D_in, 3*Dp) -> [z | r | n] gate pre-activations.
    xg_scr[...] = (
        jnp.dot(x_ref[...], wx_ref[...], preferred_element_type=jnp.float32)
        + b_ref[...].astype(jnp.float32))

    whzr = whzr_ref[...]          # (Dp, 2*Dp)  fused [Wh_z | Wh_r]
    whn = whn_ref[...]            # (Dp, Dp)

    def step(i, carry):
        # within-chunk time index in ORIGINAL order (reversed for backward dir)
        tl = i * (1 - d) + (Tc - 1 - i) * d
        row = pl.multiple_of(tl * Bp, Bp)          # Bp is a multiple of 8
        xg_t = xg_scr[pl.ds(row, Bp), :]           # (Bp, 3*Dp), f32
        h = h_scr[...]                             # (Bp, Dp), f32

        # fused update/reset gates: one h @ (Dp, 2*Dp) matmul per step
        zr = jax.nn.sigmoid(
            xg_t[:, :2 * Dp]
            + jnp.dot(h.astype(whzr.dtype), whzr,
                      preferred_element_type=jnp.float32))
        z = zr[:, :Dp]
        r = zr[:, Dp:]
        n = jnp.tanh(
            xg_t[:, 2 * Dp:]
            + jnp.dot((r * h).astype(whn.dtype), whn,
                      preferred_element_type=jnp.float32))

        h_new = (1.0 - z) * h + z * n
        h_scr[...] = h_new
        # lane-dense (Dp multiple of 128), sublane-aligned store
        out_ref[pl.ds(row, Bp), :] = h_new.astype(out_ref.dtype)
        return carry

    jax.lax.fori_loop(0, Tc, step, 0, unroll=True)

    @pl.when(c == nc - 1)
    def _():
        hT_ref[...] = h_scr[...]   # final hidden state kept in f32


# ----------------------------------------------------------------------------
# Parameter packing: pad hidden dim to a 128 multiple, fuse gates / directions.
# ----------------------------------------------------------------------------
def _pack_direction(params, Dp):
    wx, wh, b = params            # (3, D_in, D_h), (3, D_h, D_h), (3, 1, D_h)
    D_h = wh.shape[-1]
    ph = Dp - D_h
    wx_p = jnp.pad(wx, ((0, 0), (0, 0), (0, ph)))          # (3, D_in, Dp)
    wh_p = jnp.pad(wh, ((0, 0), (0, ph), (0, ph)))         # (3, Dp, Dp)
    b_p = jnp.pad(b, ((0, 0), (0, 0), (0, ph)))            # (3, 1, Dp)
    wx_cat = jnp.concatenate([wx_p[0], wx_p[1], wx_p[2]], axis=-1)  # (D_in, 3*Dp)
    b_cat = jnp.concatenate([b_p[0], b_p[1], b_p[2]], axis=-1)      # (1, 3*Dp)
    whzr = jnp.concatenate([wh_p[0], wh_p[1]], axis=-1)             # (Dp, 2*Dp)
    whn = wh_p[2]                                                    # (Dp, Dp)
    return wx_cat, b_cat, whzr, whn


# ----------------------------------------------------------------------------
# BiGRUSubLayer forward (both directions in a single pallas_call).
# ----------------------------------------------------------------------------
def bigru_sublayer(x, hidden_state, params_fwd, params_bwd, *, chunk=8):
    """x: (B, T, D_in); hidden_state: (H_fwd, H_bwd), each (B, D_h).
    params_*: (wx (3,D_in,D_h), wh (3,D_h,D_h), b (3,1,D_h))  [gates Z, R, N].
    Returns (outputs (B, T, 2*D_h), (H_fwd_T, H_bwd_T))."""
    B, T, D_in = x.shape
    h_f0, h_b0 = hidden_state
    D_h = h_f0.shape[-1]

    Dp = _round_up(D_h, LANE)     # lane-dense hidden dim
    Bp = _round_up(B, SUBLANE)    # sublane-aligned batch
    Tc = _pick_chunk(T, chunk)
    nc = T // Tc
    TcBp = Tc * Bp

    # NOTE: for v6e/v7x, weights may be passed in bf16 (the kernel casts h to the
    # weight dtype and accumulates in f32); kept f32 here for a tight check.
    pf = _pack_direction(params_fwd, Dp)
    pb = _pack_direction(params_bwd, Dp)
    wx_cat = jnp.stack([pf[0], pb[0]])        # (2, D_in, 3*Dp)
    b_cat = jnp.stack([pf[1], pb[1]])         # (2, 1, 3*Dp)
    whzr_cat = jnp.stack([pf[2], pb[2]])      # (2, Dp, 2*Dp)
    whn_cat = jnp.stack([pf[3], pb[3]])       # (2, Dp, Dp)

    h0 = jnp.stack([h_f0, h_b0])              # (2, B, D_h)
    h0 = jnp.pad(h0, ((0, 0), (0, Bp - B), (0, Dp - D_h)))   # (2, Bp, Dp)

    # time-major, batch-padded, flattened (T*Bp, D_in) for clean 2D chunk matmuls
    x_p = jnp.pad(x, ((0, Bp - B), (0, 0), (0, 0)))          # (Bp, T, D_in)
    x_flat = jnp.transpose(x_p, (1, 0, 2)).reshape(T * Bp, D_in)

    def x_map(d, c):      # chunk index in original order; reversed for backward
        return ((1 - d) * c + d * (nc - 1 - c), 0)

    def out_map(d, c):
        return (d, (1 - d) * c + d * (nc - 1 - c), 0)

    const3 = lambda d, c: (d, 0, 0)

    out_flat, hT = pl.pallas_call(
        _bigru_kernel,
        out_shape=(jax.ShapeDtypeStruct((2, T * Bp, Dp), x.dtype),
                   jax.ShapeDtypeStruct((2, Bp, Dp), jnp.float32)),
        grid_spec=pltpu.PrefetchScalarGridSpec(
            num_scalar_prefetch=0,
            grid=(2, nc),
            in_specs=[
                pl.BlockSpec((TcBp, D_in), x_map),               # x chunk
                pl.BlockSpec((None, Bp, Dp), const3),            # h0 per direction
                pl.BlockSpec((None, D_in, 3 * Dp), const3),      # fused Wx
                pl.BlockSpec((None, 1, 3 * Dp), const3),         # fused bias
                pl.BlockSpec((None, Dp, 2 * Dp), const3),        # fused Wh_z|Wh_r
                pl.BlockSpec((None, Dp, Dp), const3),            # Wh_n
            ],
            out_specs=[
                pl.BlockSpec((None, TcBp, Dp), out_map),         # outputs chunk
                pl.BlockSpec((None, Bp, Dp), const3),            # final hidden
            ],
            scratch_shapes=[
                pltpu.VMEM((Bp, Dp), jnp.float32),               # hidden state
                pltpu.VMEM((TcBp, 3 * Dp), jnp.float32),         # chunk x-projection
            ],
        ),
        compiler_params=pltpu.CompilerParams(
            dimension_semantics=("parallel", "arbitrary")),
    )(x_flat, h0, wx_cat, b_cat, whzr_cat, whn_cat)

    out = out_flat.reshape(2, T, Bp, Dp)[:, :, :B, :D_h]        # (2, T, B, D_h)
    out_f = jnp.transpose(out[0], (1, 0, 2))                    # (B, T, D_h)
    out_b = jnp.transpose(out[1], (1, 0, 2))
    outputs = jnp.concatenate([out_f, out_b], axis=2)           # (B, T, 2*D_h)
    h_f = hT[0, :B, :D_h].astype(h_f0.dtype)
    h_b = hT[1, :B, :D_h].astype(h_b0.dtype)
    return outputs, (h_f, h_b)


# ----------------------------------------------------------------------------
# Deterministic parameter init (mirrors nn.Linear(dim_input+dim_hidden, dim_hidden)
# default uniform(-1/sqrt(fan_in), 1/sqrt(fan_in)) init; split into Wx / Wh).
# ----------------------------------------------------------------------------
def init_gru_params(key, d_in, d_h, dtype=jnp.float32):
    fan_in = d_in + d_h
    bound = 1.0 / jnp.sqrt(jnp.asarray(fan_in, jnp.float32))
    kw, kb = jax.random.split(key)
    w = jax.random.uniform(kw, (3, fan_in, d_h), dtype, -bound, bound)
    b = jax.random.uniform(kb, (3, 1, d_h), dtype, -bound, bound)
    wx = w[:, :d_in, :]     # (3, D_in, D_h)
    wh = w[:, d_in:, :]     # (3, D_h,  D_h)
    return wx, wh, b


# ----------------------------------------------------------------------------
# Pure-JAX reference (lax.scan) for a sanity check of the kernel.
# ----------------------------------------------------------------------------
def gru_reference(x, h0, wx, wh, b, direction):
    def step(h, x_t):
        z = jax.nn.sigmoid(x_t @ wx[0] + h @ wh[0] + b[0])
        r = jax.nn.sigmoid(x_t @ wx[1] + h @ wh[1] + b[1])
        n = jnp.tanh(x_t @ wx[2] + (r * h) @ wh[2] + b[2])
        h_new = (1.0 - z) * h + z * n
        return h_new, h_new

    xs = jnp.transpose(x, (1, 0, 2))
    if direction == -1:
        xs = xs[::-1]
    h_T, outs = jax.lax.scan(step, h0, xs)
    if direction == -1:
        outs = outs[::-1]
    return jnp.transpose(outs, (1, 0, 2)), h_T


if __name__ == "__main__":
    B, T, D_IN, D_H = 2, 8, 16, 32

    key = jax.random.PRNGKey(0)
    k_x, k_f, k_b = jax.random.split(key, 3)

    x = jax.random.normal(k_x, (B, T, D_IN), jnp.float32)
    h_fwd0 = jnp.zeros((B, D_H), jnp.float32)
    h_bwd0 = jnp.zeros((B, D_H), jnp.float32)

    params_fwd = init_gru_params(k_f, D_IN, D_H)
    params_bwd = init_gru_params(k_b, D_IN, D_H)

    fn = jax.jit(functools.partial(bigru_sublayer,
                                   params_fwd=params_fwd,
                                   params_bwd=params_bwd,
                                   chunk=4))          # Tc=4 -> 2 chunks: exercises carry
    outputs, (h_f, h_b) = fn(x, (h_fwd0, h_bwd0))
    jax.block_until_ready((outputs, h_f, h_b))

    # sanity check against pure-JAX reference
    ref_f, ref_hf = gru_reference(x, h_fwd0, *params_fwd, direction=1)
    ref_b, ref_hb = gru_reference(x, h_bwd0, *params_bwd, direction=-1)
    ref_out = jnp.concatenate([ref_f, ref_b], axis=2)

    assert outputs.shape == (B, T, 2 * D_H)
    assert h_f.shape == (B, D_H) and h_b.shape == (B, D_H)
    assert jnp.allclose(outputs, ref_out, atol=1e-4, rtol=1e-4)
    assert jnp.allclose(h_f, ref_hf, atol=1e-4, rtol=1e-4)
    assert jnp.allclose(h_b, ref_hb, atol=1e-4, rtol=1e-4)

    print("KERNEL_OK")
</pallas_src>

<mosaic_0001>
module attributes {stable_mosaic.version = 11 : i64} {
  func.func @_bigru_kernel(%arg0: i32, %arg1: i32, %arg2: memref<32x16xf32, #tpu.memory_space<vmem>>, %arg3: memref<1x8x128xf32, #tpu.memory_space<vmem>>, %arg4: memref<1x16x384xf32, #tpu.memory_space<vmem>>, %arg5: memref<1x1x384xf32, #tpu.memory_space<vmem>>, %arg6: memref<1x128x256xf32, #tpu.memory_space<vmem>>, %arg7: memref<1x128x128xf32, #tpu.memory_space<vmem>>, %arg8: memref<1x32x128xf32, #tpu.memory_space<vmem>>, %arg9: memref<1x8x128xf32, #tpu.memory_space<vmem>>, %arg10: memref<8x128xf32, #tpu.memory_space<vmem>>, %arg11: memref<32x384xf32, #tpu.memory_space<vmem>>) attributes {dimension_semantics = [#tpu.dimension_semantics<parallel>, #tpu.dimension_semantics<arbitrary>], iteration_bounds = array<i64: 2, 2>, scalar_prefetch = 0 : i64, scratch_operands = 2 : i64, tpu.core_type = #tpu.core_type<tc>, window_params = [{transform_indices = @transform_0, window_bounds = array<i64: 32, 16>}, {transform_indices = @transform_1, window_bounds = array<i64: 1, 8, 128>}, {transform_indices = @transform_2, window_bounds = array<i64: 1, 16, 384>}, {transform_indices = @transform_3, window_bounds = array<i64: 1, 1, 384>}, {transform_indices = @transform_4, window_bounds = array<i64: 1, 128, 256>}, {transform_indices = @transform_5, window_bounds = array<i64: 1, 128, 128>}, {transform_indices = @transform_6, window_bounds = array<i64: 1, 32, 128>}, {transform_indices = @transform_7, window_bounds = array<i64: 1, 8, 128>}]} {
    %c0_i32 = arith.constant 0 : i32
    %0 = arith.cmpi eq, %arg1, %c0_i32 : i32
    %1 = arith.extui %0 : i1 to i32
    %c0_i32_0 = arith.constant 0 : i32
    %2 = arith.cmpi ne, %1, %c0_i32_0 : i32
    scf.if %2 {
      %c0_74 = arith.constant 0 : index
      %c0_75 = arith.constant 0 : index
      %c0_76 = arith.constant 0 : index
      %159 = vector.load %arg3[%c0_74, %c0_75, %c0_76] : memref<1x8x128xf32, #tpu.memory_space<vmem>>, vector<1x8x128xf32>
      %160 = vector.shape_cast %159 : vector<1x8x128xf32> to vector<8x128xf32>
      %c0_77 = arith.constant 0 : index
      %c0_78 = arith.constant 0 : index
      %161 = vector.load %arg10[%c0_77, %c0_78] : memref<8x128xf32, #tpu.memory_space<vmem>>, vector<8x128xf32>
      tpu.vector_store %arg10[%c0_77, %c0_78], %160 {strides = array<i32>} : memref<8x128xf32, #tpu.memory_space<vmem>>, vector<8x128xf32>,
    } else {
    }
    %c0 = arith.constant 0 : index
    %c0_1 = arith.constant 0 : index
    %3 = vector.load %arg2[%c0, %c0_1] : memref<32x16xf32, #tpu.memory_space<vmem>>, vector<32x16xf32>
    %c0_2 = arith.constant 0 : index
    %c0_3 = arith.constant 0 : index
    %c0_4 = arith.constant 0 : index
    %4 = vector.load %arg4[%c0_2, %c0_3, %c0_4] : memref<1x16x384xf32, #tpu.memory_space<vmem>>, vector<1x16x384xf32>
    %5 = vector.shape_cast %4 : vector<1x16x384xf32> to vector<16x384xf32>
    %cst = arith.constant dense<0.000000e+00> : vector<32x384xf32>
    %6 = tpu.matmul %3, %5, %cst {dimension_numbers = #tpu.dot_dimension_numbers<[1], [0], [0], [1], [0, 0, 1, 1], [], []>} : vector<32x16xf32>, vector<16x384xf32>, vector<32x384xf32> -> vector<32x384xf32>
    %c0_5 = arith.constant 0 : index
    %c0_6 = arith.constant 0 : index
    %c0_7 = arith.constant 0 : index
    %7 = vector.load %arg5[%c0_5, %c0_6, %c0_7] : memref<1x1x384xf32, #tpu.memory_space<vmem>>, vector<1x1x384xf32>
    %8 = vector.shape_cast %7 : vector<1x1x384xf32> to vector<1x384xf32>
    %9 = vector.broadcast %8 : vector<1x384xf32> to vector<32x384xf32>
    %10 = arith.addf %6, %9 : vector<32x384xf32>
    %c0_8 = arith.constant 0 : index
    %c0_9 = arith.constant 0 : index
    %11 = vector.load %arg11[%c0_8, %c0_9] : memref<32x384xf32, #tpu.memory_space<vmem>>, vector<32x384xf32>
    tpu.vector_store %arg11[%c0_8, %c0_9], %10 {strides = array<i32>} : memref<32x384xf32, #tpu.memory_space<vmem>>, vector<32x384xf32>,
    %c0_10 = arith.constant 0 : index
    %c0_11 = arith.constant 0 : index
    %c0_12 = arith.constant 0 : index
    %12 = vector.load %arg6[%c0_10, %c0_11, %c0_12] : memref<1x128x256xf32, #tpu.memory_space<vmem>>, vector<1x128x256xf32>
    %13 = vector.shape_cast %12 : vector<1x128x256xf32> to vector<128x256xf32>
    %c0_13 = arith.constant 0 : index
    %c0_14 = arith.constant 0 : index
    %c0_15 = arith.constant 0 : index
    %14 = vector.load %arg7[%c0_13, %c0_14, %c0_15] : memref<1x128x128xf32, #tpu.memory_space<vmem>>, vector<1x128x128xf32>
    %15 = vector.shape_cast %14 : vector<1x128x128xf32> to vector<128x128xf32>
    %c0_i32_16 = arith.constant 0 : i32
    %c1_i32 = arith.constant 1 : i32
    %16 = arith.subi %c1_i32, %arg0 : i32
    %17 = arith.muli %c0_i32_16, %16 : i32
    %c3_i32 = arith.constant 3 : i32
    %18 = arith.subi %c3_i32, %c0_i32_16 : i32
    %19 = arith.muli %18, %arg0 : i32
    %20 = arith.addi %17, %19 : i32
    %c8_i32 = arith.constant 8 : i32
    %21 = arith.muli %20, %c8_i32 : i32
    %22 = tpu.assume_multiple %21, 8 : i32
    %23 = arith.index_cast %22 : i32 to index
    %c0_17 = arith.constant 0 : index
    %24 = vector.load %arg11[%23, %c0_17] : memref<32x384xf32, #tpu.memory_space<vmem>>, vector<8x384xf32>
    %c0_18 = arith.constant 0 : index
    %c0_19 = arith.constant 0 : index
    %25 = vector.load %arg10[%c0_18, %c0_19] : memref<8x128xf32, #tpu.memory_space<vmem>>, vector<8x128xf32>
    %26 = vector.extract_strided_slice %24 {offsets = [0, 0], sizes = [8, 256], strides = [1, 1]} : vector<8x384xf32> to vector<8x256xf32>
    %cst_20 = arith.constant dense<0.000000e+00> : vector<8x256xf32>
    %27 = tpu.matmul %25, %13, %cst_20 {dimension_numbers = #tpu.dot_dimension_numbers<[1], [0], [0], [1], [0, 0, 1, 1], [], []>} : vector<8x128xf32>, vector<128x256xf32>, vector<8x256xf32> -> vector<8x256xf32>
    %28 = arith.addf %26, %27 : vector<8x256xf32>
    %29 = arith.negf %28 : vector<8x256xf32>
    %30 = math.exp %29 : vector<8x256xf32>
    %cst_21 = arith.constant 1.000000e+00 : f32
    %31 = vector.broadcast %cst_21 : f32 to vector<8x256xf32>
    %32 = arith.addf %31, %30 : vector<8x256xf32>
    %33 = arith.divf %31, %32 : vector<8x256xf32>
    %34 = vector.extract_strided_slice %33 {offsets = [0, 0], sizes = [8, 128], strides = [1, 1]} : vector<8x256xf32> to vector<8x128xf32>
    %35 = vector.extract_strided_slice %33 {offsets = [0, 128], sizes = [8, 128], strides = [1, 1]} : vector<8x256xf32> to vector<8x128xf32>
    %36 = vector.extract_strided_slice %24 {offsets = [0, 256], sizes = [8, 128], strides = [1, 1]} : vector<8x384xf32> to vector<8x128xf32>
    %37 = arith.mulf %35, %25 : vector<8x128xf32>
    %cst_22 = arith.constant dense<0.000000e+00> : vector<8x128xf32>
    %38 = tpu.matmul %37, %15, %cst_22 {dimension_numbers = #tpu.dot_dimension_numbers<[1], [0], [0], [1], [0, 0, 1, 1], [], []>} : vector<8x128xf32>, vector<128x128xf32>, vector<8x128xf32> -> vector<8x128xf32>
    %39 = arith.addf %36, %38 : vector<8x128xf32>
    %40 = math.tanh %39 : vector<8x128xf32>
    %cst_23 = arith.constant 1.000000e+00 : f32
    %41 = vector.broadcast %cst_23 : f32 to vector<8x128xf32>
    %42 = arith.subf %41, %34 : vector<8x128xf32>
    %43 = arith.mulf %42, %25 : vector<8x128xf32>
    %44 = arith.mulf %34, %40 : vector<8x128xf32>
    %45 = arith.addf %43, %44 : vector<8x128xf32>
    %c0_24 = arith.constant 0 : index
    %c0_25 = arith.constant 0 : index
    %46 = vector.load %arg10[%c0_24, %c0_25] : memref<8x128xf32, #tpu.memory_space<vmem>>, vector<8x128xf32>
    tpu.vector_store %arg10[%c0_24, %c0_25], %45 {strides = array<i32>} : memref<8x128xf32, #tpu.memory_space<vmem>>, vector<8x128xf32>,
    %c0_26 = arith.constant 0 : index
    %47 = arith.index_cast %22 : i32 to index
    %c0_27 = arith.constant 0 : index
    %48 = vector.load %arg8[%c0_26, %47, %c0_27] : memref<1x32x128xf32, #tpu.memory_space<vmem>>, vector<1x8x128xf32>
    %49 = vector.shape_cast %48 : vector<1x8x128xf32> to vector<8x128xf32>
    %50 = vector.shape_cast %45 : vector<8x128xf32> to vector<1x8x128xf32>
    tpu.vector_store %arg8[%c0_26, %47, %c0_27], %50 {strides = array<i32>} : memref<1x32x128xf32, #tpu.memory_space<vmem>>, vector<1x8x128xf32>,
    %c1_i32_28 = arith.constant 1 : i32
    %c1_i32_29 = arith.constant 1 : i32
    %51 = arith.subi %c1_i32_29, %arg0 : i32
    %52 = arith.muli %c1_i32_28, %51 : i32
    %c3_i32_30 = arith.constant 3 : i32
    %53 = arith.subi %c3_i32_30, %c1_i32_28 : i32
    %54 = arith.muli %53, %arg0 : i32
    %55 = arith.addi %52, %54 : i32
    %c8_i32_31 = arith.constant 8 : i32
    %56 = arith.muli %55, %c8_i32_31 : i32
    %57 = tpu.assume_multiple %56, 8 : i32
    %58 = arith.index_cast %57 : i32 to index
    %c0_32 = arith.constant 0 : index
    %59 = vector.load %arg11[%58, %c0_32] : memref<32x384xf32, #tpu.memory_space<vmem>>, vector<8x384xf32>
    %c0_33 = arith.constant 0 : index
    %c0_34 = arith.constant 0 : index
    %60 = vector.load %arg10[%c0_33, %c0_34] : memref<8x128xf32, #tpu.memory_space<vmem>>, vector<8x128xf32>
    %61 = vector.extract_strided_slice %59 {offsets = [0, 0], sizes = [8, 256], strides = [1, 1]} : vector<8x384xf32> to vector<8x256xf32>
    %cst_35 = arith.constant dense<0.000000e+00> : vector<8x256xf32>
    %62 = tpu.matmul %60, %13, %cst_35 {dimension_numbers = #tpu.dot_dimension_numbers<[1], [0], [0], [1], [0, 0, 1, 1], [], []>} : vector<8x128xf32>, vector<128x256xf32>, vector<8x256xf32> -> vector<8x256xf32>
    %63 = arith.addf %61, %62 : vector<8x256xf32>
    %64 = arith.negf %63 : vector<8x256xf32>
    %65 = math.exp %64 : vector<8x256xf32>
    %cst_36 = arith.constant 1.000000e+00 : f32
    %66 = vector.broadcast %cst_36 : f32 to vector<8x256xf32>
    %67 = arith.addf %66, %65 : vector<8x256xf32>
    %68 = arith.divf %66, %67 : vector<8x256xf32>
    %69 = vector.extract_strided_slice %68 {offsets = [0, 0], sizes = [8, 128], strides = [1, 1]} : vector<8x256xf32> to vector<8x128xf32>
    %70 = vector.extract_strided_slice %68 {offsets = [0, 128], sizes = [8, 128], strides = [1, 1]} : vector<8x256xf32> to vector<8x128xf32>
    %71 = vector.extract_strided_slice %59 {offsets = [0, 256], sizes = [8, 128], strides = [1, 1]} : vector<8x384xf32> to vector<8x128xf32>
    %72 = arith.mulf %70, %60 : vector<8x128xf32>
    %cst_37 = arith.constant dense<0.000000e+00> : vector<8x128xf32>
    %73 = tpu.matmul %72, %15, %cst_37 {dimension_numbers = #tpu.dot_dimension_numbers<[1], [0], [0], [1], [0, 0, 1, 1], [], []>} : vector<8x128xf32>, vector<128x128xf32>, vector<8x128xf32> -> vector<8x128xf32>
    %74 = arith.addf %71, %73 : vector<8x128xf32>
    %75 = math.tanh %74 : vector<8x128xf32>
    %cst_38 = arith.constant 1.000000e+00 : f32
    %76 = vector.broadcast %cst_38 : f32 to vector<8x128xf32>
    %77 = arith.subf %76, %69 : vector<8x128xf32>
    %78 = arith.mulf %77, %60 : vector<8x128xf32>
    %79 = arith.mulf %69, %75 : vector<8x128xf32>
    %80 = arith.addf %78, %79 : vector<8x128xf32>
    %c0_39 = arith.constant 0 : index
    %c0_40 = arith.constant 0 : index
    %81 = vector.load %arg10[%c0_39, %c0_40] : memref<8x128xf32, #tpu.memory_space<vmem>>, vector<8x128xf32>
    tpu.vector_store %arg10[%c0_39, %c0_40], %80 {strides = array<i32>} : memref<8x128xf32, #tpu.memory_space<vmem>>, vector<8x128xf32>,
    %c0_41 = arith.constant 0 : index
    %82 = arith.index_cast %57 : i32 to index
    %c0_42 = arith.constant 0 : index
    %83 = vector.load %arg8[%c0_41, %82, %c0_42] : memref<1x32x128xf32, #tpu.memory_space<vmem>>, vector<1x8x128xf32>
    %84 = vector.shape_cast %83 : vector<1x8x128xf32> to vector<8x128xf32>
    %85 = vector.shape_cast %80 : vector<8x128xf32> to vector<1x8x128xf32>
    tpu.vector_store %arg8[%c0_41, %82, %c0_42], %85 {strides = array<i32>} : memref<1x32x128xf32, #tpu.memory_space<vmem>>, vector<1x8x128xf32>,
    %c2_i32 = arith.constant 2 : i32
    %c1_i32_43 = arith.constant 1 : i32
    %86 = arith.subi %c1_i32_43, %arg0 : i32
    %87 = arith.muli %c2_i32, %86 : i32
    %c3_i32_44 = arith.constant 3 : i32
    %88 = arith.subi %c3_i32_44, %c2_i32 : i32
    %89 = arith.muli %88, %arg0 : i32
    %90 = arith.addi %87, %89 : i32
    %c8_i32_45 = arith.constant 8 : i32
    %91 = arith.muli %90, %c8_i32_45 : i32
    %92 = tpu.assume_multiple %91, 8 : i32
    %93 = arith.index_cast %92 : i32 to index
    %c0_46 = arith.constant 0 : index
    %94 = vector.load %arg11[%93, %c0_46] : memref<32x384xf32, #tpu.memory_space<vmem>>, vector<8x384xf32>
    %c0_47 = arith.constant 0 : index
    %c0_48 = arith.constant 0 : index
    %95 = vector.load %arg10[%c0_47, %c0_48] : memref<8x128xf32, #tpu.memory_space<vmem>>, vector<8x128xf32>
    %96 = vector.extract_strided_slice %94 {offsets = [0, 0], sizes = [8, 256], strides = [1, 1]} : vector<8x384xf32> to vector<8x256xf32>
    %cst_49 = arith.constant dense<0.000000e+00> : vector<8x256xf32>
    %97 = tpu.matmul %95, %13, %cst_49 {dimension_numbers = #tpu.dot_dimension_numbers<[1], [0], [0], [1], [0, 0, 1, 1], [], []>} : vector<8x128xf32>, vector<128x256xf32>, vector<8x256xf32> -> vector<8x256xf32>
    %98 = arith.addf %96, %97 : vector<8x256xf32>
    %99 = arith.negf %98 : vector<8x256xf32>
    %100 = math.exp %99 : vector<8x256xf32>
    %cst_50 = arith.constant 1.000000e+00 : f32
    %101 = vector.broadcast %cst_50 : f32 to vector<8x256xf32>
    %102 = arith.addf %101, %100 : vector<8x256xf32>
    %103 = arith.divf %101, %102 : vector<8x256xf32>
    %104 = vector.extract_strided_slice %103 {offsets = [0, 0], sizes = [8, 128], strides = [1, 1]} : vector<8x256xf32> to vector<8x128xf32>
    %105 = vector.extract_strided_slice %103 {offsets = [0, 128], sizes = [8, 128], strides = [1, 1]} : vector<8x256xf32> to vector<8x128xf32>
    %106 = vector.extract_strided_slice %94 {offsets = [0, 256], sizes = [8, 128], strides = [1, 1]} : vector<8x384xf32> to vector<8x128xf32>
    %107 = arith.mulf %105, %95 : vector<8x128xf32>
    %cst_51 = arith.constant dense<0.000000e+00> : vector<8x128xf32>
    %108 = tpu.matmul %107, %15, %cst_51 {dimension_numbers = #tpu.dot_dimension_numbers<[1], [0], [0], [1], [0, 0, 1, 1], [], []>} : vector<8x128xf32>, vector<128x128xf32>, vector<8x128xf32> -> vector<8x128xf32>
    %109 = arith.addf %106, %108 : vector<8x128xf32>
    %110 = math.tanh %109 : vector<8x128xf32>
    %cst_52 = arith.constant 1.000000e+00 : f32
    %111 = vector.broadcast %cst_52 : f32 to vector<8x128xf32>
    %112 = arith.subf %111, %104 : vector<8x128xf32>
    %113 = arith.mulf %112, %95 : vector<8x128xf32>
    %114 = arith.mulf %104, %110 : vector<8x128xf32>
    %115 = arith.addf %113, %114 : vector<8x128xf32>
    %c0_53 = arith.constant 0 : index
    %c0_54 = arith.constant 0 : index
    %116 = vector.load %arg10[%c0_53, %c0_54] : memref<8x128xf32, #tpu.memory_space<vmem>>, vector<8x128xf32>
    tpu.vector_store %arg10[%c0_53, %c0_54], %115 {strides = array<i32>} : memref<8x128xf32, #tpu.memory_space<vmem>>, vector<8x128xf32>,
    %c0_55 = arith.constant 0 : index
    %117 = arith.index_cast %92 : i32 to index
    %c0_56 = arith.constant 0 : index
    %118 = vector.load %arg8[%c0_55, %117, %c0_56] : memref<1x32x128xf32, #tpu.memory_space<vmem>>, vector<1x8x128xf32>
    %119 = vector.shape_cast %118 : vector<1x8x128xf32> to vector<8x128xf32>
    %120 = vector.shape_cast %115 : vector<8x128xf32> to vector<1x8x128xf32>
    tpu.vector_store %arg8[%c0_55, %117, %c0_56], %120 {strides = array<i32>} : memref<1x32x128xf32, #tpu.memory_space<vmem>>, vector<1x8x128xf32>,
    %c3_i32_57 = arith.constant 3 : i32
    %c1_i32_58 = arith.constant 1 : i32
    %121 = arith.subi %c1_i32_58, %arg0 : i32
    %122 = arith.muli %c3_i32_57, %121 : i32
    %c3_i32_59 = arith.constant 3 : i32
    %123 = arith.subi %c3_i32_59, %c3_i32_57 : i32
    %124 = arith.muli %123, %arg0 : i32
    %125 = arith.addi %122, %124 : i32
    %c8_i32_60 = arith.constant 8 : i32
    %126 = arith.muli %125, %c8_i32_60 : i32
    %127 = tpu.assume_multiple %126, 8 : i32
    %128 = arith.index_cast %127 : i32 to index
    %c0_61 = arith.constant 0 : index
    %129 = vector.load %arg11[%128, %c0_61] : memref<32x384xf32, #tpu.memory_space<vmem>>, vector<8x384xf32>
    %c0_62 = arith.constant 0 : index
    %c0_63 = arith.constant 0 : index
    %130 = vector.load %arg10[%c0_62, %c0_63] : memref<8x128xf32, #tpu.memory_space<vmem>>, vector<8x128xf32>
    %131 = vector.extract_strided_slice %129 {offsets = [0, 0], sizes = [8, 256], strides = [1, 1]} : vector<8x384xf32> to vector<8x256xf32>
    %cst_64 = arith.constant dense<0.000000e+00> : vector<8x256xf32>
    %132 = tpu.matmul %130, %13, %cst_64 {dimension_numbers = #tpu.dot_dimension_numbers<[1], [0], [0], [1], [0, 0, 1, 1], [], []>} : vector<8x128xf32>, vector<128x256xf32>, vector<8x256xf32> -> vector<8x256xf32>
    %133 = arith.addf %131, %132 : vector<8x256xf32>
    %134 = arith.negf %133 : vector<8x256xf32>
    %135 = math.exp %134 : vector<8x256xf32>
    %cst_65 = arith.constant 1.000000e+00 : f32
    %136 = vector.broadcast %cst_65 : f32 to vector<8x256xf32>
    %137 = arith.addf %136, %135 : vector<8x256xf32>
    %138 = arith.divf %136, %137 : vector<8x256xf32>
    %139 = vector.extract_strided_slice %138 {offsets = [0, 0], sizes = [8, 128], strides = [1, 1]} : vector<8x256xf32> to vector<8x128xf32>
    %140 = vector.extract_strided_slice %138 {offsets = [0, 128], sizes = [8, 128], strides = [1, 1]} : vector<8x256xf32> to vector<8x128xf32>
    %141 = vector.extract_strided_slice %129 {offsets = [0, 256], sizes = [8, 128], strides = [1, 1]} : vector<8x384xf32> to vector<8x128xf32>
    %142 = arith.mulf %140, %130 : vector<8x128xf32>
    %cst_66 = arith.constant dense<0.000000e+00> : vector<8x128xf32>
    %143 = tpu.matmul %142, %15, %cst_66 {dimension_numbers = #tpu.dot_dimension_numbers<[1], [0], [0], [1], [0, 0, 1, 1], [], []>} : vector<8x128xf32>, vector<128x128xf32>, vector<8x128xf32> -> vector<8x128xf32>
    %144 = arith.addf %141, %143 : vector<8x128xf32>
    %145 = math.tanh %144 : vector<8x128xf32>
    %cst_67 = arith.constant 1.000000e+00 : f32
    %146 = vector.broadcast %cst_67 : f32 to vector<8x128xf32>
    %147 = arith.subf %146, %139 : vector<8x128xf32>
    %148 = arith.mulf %147, %130 : vector<8x128xf32>
    %149 = arith.mulf %139, %145 : vector<8x128xf32>
    %150 = arith.addf %148, %149 : vector<8x128xf32>
    %c0_68 = arith.constant 0 : index
    %c0_69 = arith.constant 0 : index
    %151 = vector.load %arg10[%c0_68, %c0_69] : memref<8x128xf32, #tpu.memory_space<vmem>>, vector<8x128xf32>
    tpu.vector_store %arg10[%c0_68, %c0_69], %150 {strides = array<i32>} : memref<8x128xf32, #tpu.memory_space<vmem>>, vector<8x128xf32>,
    %c0_70 = arith.constant 0 : index
    %152 = arith.index_cast %127 : i32 to index
    %c0_71 = arith.constant 0 : index
    %153 = vector.load %arg8[%c0_70, %152, %c0_71] : memref<1x32x128xf32, #tpu.memory_space<vmem>>, vector<1x8x128xf32>
    %154 = vector.shape_cast %153 : vector<1x8x128xf32> to vector<8x128xf32>
    %155 = vector.shape_cast %150 : vector<8x128xf32> to vector<1x8x128xf32>
    tpu.vector_store %arg8[%c0_70, %152, %c0_71], %155 {strides = array<i32>} : memref<1x32x128xf32, #tpu.memory_space<vmem>>, vector<1x8x128xf32>,
    %c4_i32 = arith.constant 4 : i32
    %c1_i32_72 = arith.constant 1 : i32
    %156 = arith.cmpi eq, %arg1, %c1_i32_72 : i32
    %157 = arith.extui %156 : i1 to i32
    %c0_i32_73 = arith.constant 0 : i32
    %158 = arith.cmpi ne, %157, %c0_i32_73 : i32
    scf.if %158 {
      %c0_74 = arith.constant 0 : index
      %c0_75 = arith.constant 0 : index
      %159 = vector.load %arg10[%c0_74, %c0_75] : memref<8x128xf32, #tpu.memory_space<vmem>>, vector<8x128xf32>
      %c0_76 = arith.constant 0 : index
      %c0_77 = arith.constant 0 : index
      %c0_78 = arith.constant 0 : index
      %160 = vector.load %arg9[%c0_76, %c0_77, %c0_78] : memref<1x8x128xf32, #tpu.memory_space<vmem>>, vector<1x8x128xf32>
      %161 = vector.shape_cast %160 : vector<1x8x128xf32> to vector<8x128xf32>
      %162 = vector.shape_cast %159 : vector<8x128xf32> to vector<1x8x128xf32>
      tpu.vector_store %arg9[%c0_76, %c0_77, %c0_78], %162 {strides = array<i32>} : memref<1x8x128xf32, #tpu.memory_space<vmem>>, vector<1x8x128xf32>,
    } else {
    }
    return
  }
  func.func @transform_0(%arg0: i32, %arg1: i32) -> (i32, i32) {
    %c1_i32 = arith.constant 1 : i32
    %0 = arith.subi %c1_i32, %arg0 : i32
    %1 = arith.muli %0, %arg1 : i32
    %c1_i32_0 = arith.constant 1 : i32
    %2 = arith.subi %c1_i32_0, %arg1 : i32
    %3 = arith.muli %arg0, %2 : i32
    %4 = arith.addi %1, %3 : i32
    %c0_i32 = arith.constant 0 : i32
    %c0_i32_1 = arith.constant 0 : i32
    return %4, %c0_i32 : i32, i32
  }
  func.func @transform_1(%arg0: i32, %arg1: i32) -> (i32, i32, i32) {
    %c0_i32 = arith.constant 0 : i32
    %c0_i32_0 = arith.constant 0 : i32
    %c0_i32_1 = arith.constant 0 : i32
    return %arg0, %c0_i32, %c0_i32_0 : i32, i32, i32
  }
  func.func @transform_2(%arg0: i32, %arg1: i32) -> (i32, i32, i32) {
    %c0_i32 = arith.constant 0 : i32
    %c0_i32_0 = arith.constant 0 : i32
    %c0_i32_1 = arith.constant 0 : i32
    return %arg0, %c0_i32, %c0_i32_0 : i32, i32, i32
  }
  func.func @transform_3(%arg0: i32, %arg1: i32) -> (i32, i32, i32) {
    %c0_i32 = arith.constant 0 : i32
    %c0_i32_0 = arith.constant 0 : i32
    %c0_i32_1 = arith.constant 0 : i32
    return %arg0, %c0_i32, %c0_i32_0 : i32, i32, i32
  }
  func.func @transform_4(%arg0: i32, %arg1: i32) -> (i32, i32, i32) {
    %c0_i32 = arith.constant 0 : i32
    %c0_i32_0 = arith.constant 0 : i32
    %c0_i32_1 = arith.constant 0 : i32
    return %arg0, %c0_i32, %c0_i32_0 : i32, i32, i32
  }
  func.func @transform_5(%arg0: i32, %arg1: i32) -> (i32, i32, i32) {
    %c0_i32 = arith.constant 0 : i32
    %c0_i32_0 = arith.constant 0 : i32
    %c0_i32_1 = arith.constant 0 : i32
    return %arg0, %c0_i32, %c0_i32_0 : i32, i32, i32
  }
  func.func @transform_6(%arg0: i32, %arg1: i32) -> (i32, i32, i32) {
    %c1_i32 = arith.constant 1 : i32
    %0 = arith.subi %c1_i32, %arg0 : i32
    %1 = arith.muli %0, %arg1 : i32
    %c1_i32_0 = arith.constant 1 : i32
    %2 = arith.subi %c1_i32_0, %arg1 : i32
    %3 = arith.muli %arg0, %2 : i32
    %4 = arith.addi %1, %3 : i32
    %c0_i32 = arith.constant 0 : i32
    %c0_i32_1 = arith.constant 0 : i32
    return %arg0, %4, %c0_i32 : i32, i32, i32
  }
  func.func @transform_7(%arg0: i32, %arg1: i32) -> (i32, i32, i32) {
    %c0_i32 = arith.constant 0 : i32
    %c0_i32_0 = arith.constant 0 : i32
    %c0_i32_1 = arith.constant 0 : i32
    return %arg0, %c0_i32, %c0_i32_0 : i32, i32, i32
  }
}

</mosaic_0001>

<llo_original>
// kernel: bigru_sublayer.1
$region0: #{bigru_sublayer.1}
  #allocation0 [shape = 'u32[]', space=smem, size = 0x4, offset = 0x4, fixed_abs, tag = 'smem constant byte address 0x4 - core index']
  #allocation1 [shape = 'u32[72,128]{1,0:T(1,128)}', space=vmem, size = 0x9000, scoped, tag = 'internal scratch']
  #allocation2 [shape = 'f32[8,128]{1,0:T(8,128)}', space=vmem, size = 0x1000, scoped, tag = 'scratch operand']
  #allocation3 [shape = 'f32[32,384]{1,0:T(8,128)}', space=vmem, size = 0xc000, scoped, tag = 'scratch operand']
  %s0 = inlined_call_operand.vmem [shape: f32[64,16], index: 0, kind: input, shape index: {}]
  %s1 = inlined_call_operand.vmem [shape: f32[2,8,128], index: 1, kind: input, shape index: {}]
  %s2 = inlined_call_operand.vmem [shape: f32[2,16,384], index: 2, kind: input, shape index: {}]
  %s3 = inlined_call_operand.vmem [shape: f32[2,1,384], index: 3, kind: input, shape index: {}]
  %s4 = inlined_call_operand.hbm [shape: f32[2,128,256], index: 4, kind: input, shape index: {}]
  %s5 = inlined_call_operand.hbm [shape: f32[2,128,128], index: 5, kind: input, shape index: {}]
  %s6 = inlined_call_operand.vmem [shape: f32[2,64,128], index: 6, kind: output, shape index: {0}]
  %s7 = inlined_call_operand.vmem [shape: f32[2,8,128], index: 7, kind: output, shape index: {1}]
  %8 = xla_tuple %s6, %s7
  %s9 = sld [smem:[#allocation0]]
  $region81: #{bigru_sublayer.1} parent=0
    _
  %s11 = ssub.s32 1, %s9
  %s12 = scalar_select 0, %s11, %s9
  $region1: #{bigru_sublayer.1} parent=0
    #allocation4 [shape = 'u8[262144]{0}', space=vmem, size = 0x40000, scoped, tag = 'input window, operand 4']
    #allocation5 [shape = 's32[2]{0}', space=sflag, size = 0x8, scoped, tag = 'scoped memory for bigru_sublayer.1']
    #allocation6 [shape = 'u8[131072]{0}', space=vmem, size = 0x20000, scoped, tag = 'input window, operand 5']
    #allocation7 [shape = 's32[2]{0}', space=sflag, size = 0x8, scoped, tag = 'scoped memory for bigru_sublayer.1']
    %13 = vsyncpa [#allocation5], 0
    %s14 = scalar_lea.sflag [#allocation5], 1
    %15 = vsyncpa %s14, 0
    %16 = vsyncpa [#allocation7], 0
    %s17 = scalar_lea.sflag [#allocation7], 1
    %18 = vsyncpa %s17, 0
    loop: start=0, step=1, limit=6
    $region2: #{bigru_sublayer.1} parent=1 // loop_pre_header
      _
    $region3: #{bigru_sublayer.1} parent=1 // loop_header
      %s20 = sphi 0, %s24
      %p21 = scmp.ge.s32.totalorder %s20, 6
      %s27 = sphi 0, %s39
      %s28 = sphi 0, %s35
      %s29 = sphi 0, %s27
      %s30 = sphi 0, %s28
      %s31 = sphi 0, %s29
      %s32 = sphi 0, %s30
      %s52 = sphi 0, %s54
      %s55 = sphi 0, %s52
      %s56 = sphi 0, %s55
      %s72 = sphi 0, %s56
      %s78 = sphi 0, %s80
      %s81 = sphi 0, %s78
      %s82 = sphi 0, %s81
      %s98 = sphi 0, %s82
      %s104 = sphi 0, %s106
      %s107 = sphi 0, %s104
      %s108 = sphi 0, %s107
      %s124 = sphi 0, %s108
      %s130 = sphi 0, %s132
      %s133 = sphi 0, %s130
      %s134 = sphi 0, %s133
      %s150 = sphi 0, %s134
      %s156 = sphi 0, %s158
      %s159 = sphi 0, %s156
      %s160 = sphi 0, %s159
      %s176 = sphi 0, %s160
      %s182 = sphi 0, %s184
      %s185 = sphi 0, %s182
      %s186 = sphi 0, %s185
      %s202 = sphi 0, %s186
      %s220 = sphi 0, %s222
      %s223 = sphi 0, %s220
      %s224 = sphi 0, %s223
      %s240 = sphi 0, %s224
      %s246 = sphi 0, %s248
      %s249 = sphi 0, %s246
      %s250 = sphi 0, %s249
      %s266 = sphi 0, %s250
    $region4: #{bigru_sublayer.1} parent=1 // loop_header_branch
      %23 = sbr.rel (%p21) target = $region8
    $region5: #{bigru_sublayer.1} parent=1 // loop_body
      %s25 = ssub.s32 %s20, 1
      %s26 = ssub.s32 %s20, 2
      %s33 = sadd.s32 1, %s28
      %p34 = scmp.ge.s32.totalorder %s33, 2
      %s35 = scalar_select %p34, 0, %s33
      %s36 = sadd.s32 1, %s27
      %s37 = scalar_select %p34, %s36, %s27
      %p38 = scmp.ge.s32.totalorder %s37, 2
      %s39 = scalar_select %p38, 0, %s37
      %s40 = ssub.s32 1, %s27
      %s41 = smul.u32 %s40, %s28
      %s42 = ssub.s32 1, %s28
      %s43 = smul.u32 %s27, %s42
      %s44 = sadd.s32 %s41, %s43
      %s45 = ssub.s32 1, %s39
      %s46 = smul.u32 %s45, %s35
      %s47 = ssub.s32 1, %s35
      %s48 = smul.u32 %s39, %s47
      %s49 = sadd.s32 %s46, %s48
      %s50 = ssub.s32 %s44, %s49
      %p51 = scmp.eq.s32.totalorder %s50, 0
      %s53 = sadd.s32 %s52, 1
      %s54 = scalar_select %p51, %s52, %s53
      %p57 = pneg %p51
      %p58 = scmp.eq.s32.totalorder %s20, 3
      %p59 = por %p57, %p58
      %p60 = scmp.ne.s32.totalorder %s52, %s55
      %p61 = scmp.eq.s32.totalorder %s20, 0
      %p62 = por %p60, %p61
      %p63 = scmp.ne.s32.totalorder %s52, %s55
      %p64 = scmp.eq.s32.totalorder %s25, 3
      %p65 = por %p63, %p64
      %p66 = scmp.ne.s32.totalorder %s55, %s56
      %p67 = scmp.eq.s32.totalorder %s25, 0
      %p68 = por %p66, %p67
      %p69 = scmp.ne.s32.totalorder %s55, %s56
      %p70 = scmp.eq.s32.totalorder %s26, 3
      %p71 = por %p69, %p70
      %p73 = scmp.ne.s32.totalorder %s56, %s72
      %p74 = scmp.eq.s32.totalorder %s26, 0
      %p75 = por %p73, %p74
      %s76 = ssub.s32 %s27, %s39
      %p77 = scmp.eq.s32.totalorder %s76, 0
      %s79 = sadd.s32 %s78, 1
      %s80 = scalar_select %p77, %s78, %s79
      %p83 = pneg %p77
      %p84 = scmp.eq.s32.totalorder %s20, 3
      %p85 = por %p83, %p84
      %p86 = scmp.ne.s32.totalorder %s78, %s81
      %p87 = scmp.eq.s32.totalorder %s20, 0
      %p88 = por %p86, %p87
      %p89 = scmp.ne.s32.totalorder %s78, %s81
      %p90 = scmp.eq.s32.totalorder %s25, 3
      %p91 = por %p89, %p90
      %p92 = scmp.ne.s32.totalorder %s81, %s82
      %p93 = scmp.eq.s32.totalorder %s25, 0
      %p94 = por %p92, %p93
      %p95 = scmp.ne.s32.totalorder %s81, %s82
      %p96 = scmp.eq.s32.totalorder %s26, 3
      %p97 = por %p95, %p96
      %p99 = scmp.ne.s32.totalorder %s82, %s98
      %p100 = scmp.eq.s32.totalorder %s26, 0
      %p101 = por %p99, %p100
      %s102 = ssub.s32 %s27, %s39
      %p103 = scmp.eq.s32.totalorder %s102, 0
      %s105 = sadd.s32 %s104, 1
      %s106 = scalar_select %p103, %s104, %s105
      %p109 = pneg %p103
      %p110 = scmp.eq.s32.totalorder %s20, 3
      %p111 = por %p109, %p110
      %p112 = scmp.ne.s32.totalorder %s104, %s107
      %p113 = scmp.eq.s32.totalorder %s20, 0
      %p114 = por %p112, %p113
      %p115 = scmp.ne.s32.totalorder %s104, %s107
      %p116 = scmp.eq.s32.totalorder %s25, 3
      %p117 = por %p115, %p116
      %p118 = scmp.ne.s32.totalorder %s107, %s108
      %p119 = scmp.eq.s32.totalorder %s25, 0
      %p120 = por %p118, %p119
      %p121 = scmp.ne.s32.totalorder %s107, %s108
      %p122 = scmp.eq.s32.totalorder %s26, 3
      %p123 = por %p121, %p122
      %p125 = scmp.ne.s32.totalorder %s108, %s124
      %p126 = scmp.eq.s32.totalorder %s26, 0
      %p127 = por %p125, %p126
      %s128 = ssub.s32 %s27, %s39
      %p129 = scmp.eq.s32.totalorder %s128, 0
      %s131 = sadd.s32 %s130, 1
      %s132 = scalar_select %p129, %s130, %s131
      %p135 = pneg %p129
      %p136 = scmp.eq.s32.totalorder %s20, 3
      %p137 = por %p135, %p136
      %p138 = scmp.ne.s32.totalorder %s130, %s133
      %p139 = scmp.eq.s32.totalorder %s20, 0
      %p140 = por %p138, %p139
      %p141 = scmp.ne.s32.totalorder %s130, %s133
      %p142 = scmp.eq.s32.totalorder %s25, 3
      %p143 = por %p141, %p142
      %p144 = scmp.ne.s32.totalorder %s133, %s134
      %p145 = scmp.eq.s32.totalorder %s25, 0
      %p146 = por %p144, %p145
      %p147 = scmp.ne.s32.totalorder %s133, %s134
      %p148 = scmp.eq.s32.totalorder %s26, 3
      %p149 = por %p147, %p148
      %p151 = scmp.ne.s32.totalorder %s134, %s150
      %p152 = scmp.eq.s32.totalorder %s26, 0
      %p153 = por %p151, %p152
      %s154 = ssub.s32 %s27, %s39
      %p155 = scmp.eq.s32.totalorder %s154, 0
      %s157 = sadd.s32 %s156, 1
      %s158 = scalar_select %p155, %s156, %s157
      %p161 = pneg %p155
      %p162 = scmp.eq.s32.totalorder %s20, 3
      %p163 = por %p161, %p162
      %p164 = scmp.ne.s32.totalorder %s156, %s159
      %p165 = scmp.eq.s32.totalorder %s20, 0
      %p166 = por %p164, %p165
      %p167 = scmp.ne.s32.totalorder %s156, %s159
      %p168 = scmp.eq.s32.totalorder %s25, 3
      %p169 = por %p167, %p168
      %p170 = scmp.ne.s32.totalorder %s159, %s160
      %p171 = scmp.eq.s32.totalorder %s25, 0
      %p172 = por %p170, %p171
      %p173 = scmp.ne.s32.totalorder %s159, %s160
      %p174 = scmp.eq.s32.totalorder %s26, 3
      %p175 = por %p173, %p174
      %p177 = scmp.ne.s32.totalorder %s160, %s176
      %p178 = scmp.eq.s32.totalorder %s26, 0
      %p179 = por %p177, %p178
      %s180 = ssub.s32 %s27, %s39
      %p181 = scmp.eq.s32.totalorder %s180, 0
      %s183 = sadd.s32 %s182, 1
      %s184 = scalar_select %p181, %s182, %s183
      %p187 = pneg %p181
      %p188 = scmp.eq.s32.totalorder %s20, 3
      %p189 = por %p187, %p188
      %p190 = scmp.ne.s32.totalorder %s182, %s185
      %p191 = scmp.eq.s32.totalorder %s20, 0
      %p192 = por %p190, %p191
      %p193 = scmp.ne.s32.totalorder %s182, %s185
      %p194 = scmp.eq.s32.totalorder %s25, 3
      %p195 = por %p193, %p194
      %p196 = scmp.ne.s32.totalorder %s185, %s186
      %p197 = scmp.eq.s32.totalorder %s25, 0
      %p198 = por %p196, %p197
      %p199 = scmp.ne.s32.totalorder %s185, %s186
      %p200 = scmp.eq.s32.totalorder %s26, 3
      %p201 = por %p199, %p200
      %p203 = scmp.ne.s32.totalorder %s186, %s202
      %p204 = scmp.eq.s32.totalorder %s26, 0
      %p205 = por %p203, %p204
      %s206 = ssub.s32 1, %s27
      %s207 = smul.u32 %s206, %s28
      %s208 = ssub.s32 1, %s28
      %s209 = smul.u32 %s27, %s208
      %s210 = sadd.s32 %s207, %s209
      %s211 = ssub.s32 1, %s39
      %s212 = smul.u32 %s211, %s35
      %s213 = ssub.s32 1, %s35
      %s214 = smul.u32 %s39, %s213
      %s215 = sadd.s32 %s212, %s214
      %s216 = ssub.s32 %s27, %s39
      %s217 = ssub.s32 %s210, %s215
      %s218 = sor.u32 %s216, %s217
      %p219 = scmp.eq.s32.totalorder %s218, 0
      %s221 = sadd.s32 %s220, 1
      %s222 = scalar_select %p219, %s220, %s221
      %p225 = pneg %p219
      %p226 = scmp.eq.s32.totalorder %s20, 3
      %p227 = por %p225, %p226
      %p228 = scmp.ne.s32.totalorder %s220, %s223
      %p229 = scmp.eq.s32.totalorder %s20, 0
      %p230 = por %p228, %p229
      %p231 = scmp.ne.s32.totalorder %s220, %s223
      %p232 = scmp.eq.s32.totalorder %s25, 3
      %p233 = por %p231, %p232
      %p234 = scmp.ne.s32.totalorder %s223, %s224
      %p235 = scmp.eq.s32.totalorder %s25, 0
      %p236 = por %p234, %p235
      %p237 = scmp.ne.s32.totalorder %s223, %s224
      %p238 = scmp.eq.s32.totalorder %s26, 3
      %p239 = por %p237, %p238
      %p241 = scmp.ne.s32.totalorder %s224, %s240
      %p242 = scmp.eq.s32.totalorder %s26, 0
      %p243 = por %p241, %p242
      %s244 = ssub.s32 %s27, %s39
      %p245 = scmp.eq.s32.totalorder %s244, 0
      %s247 = sadd.s32 %s246, 1
      %s248 = scalar_select %p245, %s246, %s247
      %p251 = pneg %p245
      %p252 = scmp.eq.s32.totalorder %s20, 3
      %p253 = por %p251, %p252
      %p254 = scmp.ne.s32.totalorder %s246, %s249
      %p255 = scmp.eq.s32.totalorder %s20, 0
      %p256 = por %p254, %p255
      %p257 = scmp.ne.s32.totalorder %s246, %s249
      %p258 = scmp.eq.s32.totalorder %s25, 3
      %p259 = por %p257, %p258
      %p260 = scmp.ne.s32.totalorder %s249, %s250
      %p261 = scmp.eq.s32.totalorder %s25, 0
      %p262 = por %p260, %p261
      %p263 = scmp.ne.s32.totalorder %s249, %s250
      %p264 = scmp.eq.s32.totalorder %s26, 3
      %p265 = por %p263, %p264
      %p267 = scmp.ne.s32.totalorder %s250, %s266
      %p268 = scmp.eq.s32.totalorder %s26, 0
      %p269 = por %p267, %p268
      %p270 = scmp.le.s32.totalorder 1, %s20
      %p271 = scmp.lt.s32.totalorder %s20, 5
      %p272 = pnand %p270, %p271
      %p273 = pneg %p272
      // Predicated region
      $region9: #{bigru_sublayer.1} parent=5 // pred_check
        _
      $region10: #{bigru_sublayer.1} parent=5 // pred_check_branch
        %275 = sbr.rel (%p272) target = $region12
      $region11: #{bigru_sublayer.1} parent=5 // pred_region
        %s276 = ssub.s32 %s20, 1
      $region12: #{bigru_sublayer.1} parent=5 // pred_fallthru
        _
      %p277 = scmp.lt.s32.totalorder %s20, 4
      // Predicated region
      $region13: #{bigru_sublayer.1} parent=5 // pred_check
        %p278 = pneg %p277
      $region14: #{bigru_sublayer.1} parent=5 // pred_check_branch
        %280 = sbr.rel (%p278) target = $region16
      $region15: #{bigru_sublayer.1} parent=5 // pred_region
        // Predicated region
        $region17: #{bigru_sublayer.1} parent=15 // pred_check
          %p281 = pneg %p62
        $region18: #{bigru_sublayer.1} parent=15 // pred_check_branch
          %283 = sbr.rel (%p281) target = $region20
        $region19: #{bigru_sublayer.1} parent=15 // pred_region
          %s284 = ssub.s32 1, %s27
          %s285 = smul.u32 %s284, %s28
          %s286 = ssub.s32 1, %s28
          %s287 = smul.u32 %s27, %s286
          %s288 = sadd.s32 %s285, %s287
          %s289 = smul.u32 4, %s288
          %p290 = scmp.lt.s32.totalorder %s289, 7
          %s291 = scalar_select %p290, %s289, 7
          %s292 = smul.addr %s291, 8
          %s293 = scalar_lea.vmem %s0, %s292
          %s294 = ssub.s32 1, %s27
          %s295 = smul.u32 %s294, %s28
          %s296 = ssub.s32 1, %s28
          %s297 = smul.u32 %s27, %s296
          %s298 = sadd.s32 %s295, %s297
          %s299 = smul.u32 4, %s298
        $region20: #{bigru_sublayer.1} parent=15 // pred_fallthru
          _
        // Predicated region
        $region21: #{bigru_sublayer.1} parent=15 // pred_check
          %p300 = pneg %p88
        $region22: #{bigru_sublayer.1} parent=15 // pred_check_branch
          %302 = sbr.rel (%p300) target = $region24
        $region23: #{bigru_sublayer.1} parent=15 // pred_region
          %p303 = scmp.lt.s32.totalorder %s27, 1
          %s304 = scalar_select %p303, %s27, 1
          %s305 = smul.addr %s304, 8
          %s306 = scalar_lea.vmem %s1, %s305
        $region24: #{bigru_sublayer.1} parent=15 // pred_fallthru
          _
        // Predicated region
        $region25: #{bigru_sublayer.1} parent=15 // pred_check
          %p307 = pneg %p114
        $region26: #{bigru_sublayer.1} parent=15 // pred_check_branch
          %309 = sbr.rel (%p307) target = $region28
        $region27: #{bigru_sublayer.1} parent=15 // pred_region
          %p310 = scmp.lt.s32.totalorder %s27, 1
          %s311 = scalar_select %p310, %s27, 1
          %s312 = smul.addr %s311, 6
          %s313 = smul.addr %s312, 8
          %s314 = scalar_lea.vmem %s2, %s313
        $region28: #{bigru_sublayer.1} parent=15 // pred_fallthru
          _
        // Predicated region
        $region29: #{bigru_sublayer.1} parent=15 // pred_check
          %p315 = pneg %p140
        $region30: #{bigru_sublayer.1} parent=15 // pred_check_branch
          %317 = sbr.rel (%p315) target = $region32
        $region31: #{bigru_sublayer.1} parent=15 // pred_region
          %p318 = scmp.lt.s32.totalorder %s27, 1
          %s319 = scalar_select %p318, %s27, 1
          %s320 = smul.addr %s319, 3
          %s321 = scalar_lea.vmem %s3, %s320
        $region32: #{bigru_sublayer.1} parent=15 // pred_fallthru
          _
        // Predicated region
        $region33: #{bigru_sublayer.1} parent=15 // pred_check
          %p322 = pneg %p166
        $region34: #{bigru_sublayer.1} parent=15 // pred_check_branch
          %324 = sbr.rel (%p322) target = $region36
        $region35: #{bigru_sublayer.1} parent=15 // pred_region
          %s325 = sand.u32 %s156, 1
          %s326 = scalar_lea.sflag [#allocation5], %s325
          %s327 = sand.u32 %s156, 1
          %s328 = smul.addr %s327, 256
          %s329 = scalar_lea.vmem [#allocation4], %s328
          %331 = vsyncadd %s326, 0
          %s332 = smul.addr %s27, 32
          %s333 = smul.addr %s332, 8
          %s334 = scalar_lea.hbm %s4, %s333
          %s335 = sshll.u32 %s334, 4
          %s336 = int_to_ptr.hbm [resolvable:$true] %s335
          %s337 = sshll.u32 %s329, 4
          %s338 = int_to_ptr.vmem [resolvable:$true] %s337
          %343 = dma.hbm_to_vmem [thread:$0]  %s336, 4096, %s338, %s326, 256, 256, 16
        $region36: #{bigru_sublayer.1} parent=15 // pred_fallthru
          _
        // Predicated region
        $region37: #{bigru_sublayer.1} parent=15 // pred_check
          %p344 = pneg %p192
        $region38: #{bigru_sublayer.1} parent=15 // pred_check_branch
          %346 = sbr.rel (%p344) target = $region40
        $region39: #{bigru_sublayer.1} parent=15 // pred_region
          %s347 = sand.u32 %s182, 1
          %s348 = scalar_lea.sflag [#allocation7], %s347
          %s349 = sand.u32 %s182, 1
          %s350 = smul.addr %s349, 128
          %s351 = scalar_lea.vmem [#allocation6], %s350
          %353 = vsyncadd %s348, 0
          %s354 = smul.addr %s27, 16
          %s355 = smul.addr %s354, 8
          %s356 = scalar_lea.hbm %s5, %s355
          %s357 = sshll.u32 %s356, 4
          %s358 = int_to_ptr.hbm [resolvable:$true] %s357
          %s359 = sshll.u32 %s351, 4
          %s360 = int_to_ptr.vmem [resolvable:$true] %s359
          %365 = dma.hbm_to_vmem [thread:$0]  %s358, 2048, %s360, %s348, 128, 128, 8
        $region40: #{bigru_sublayer.1} parent=15 // pred_fallthru
          _
      $region16: #{bigru_sublayer.1} parent=5 // pred_fallthru
        _
      %p366 = scmp.le.s32.totalorder 1, %s20
      %p367 = scmp.lt.s32.totalorder %s20, 5
      %p368 = pnand %p366, %p367
      %p369 = pneg %p368
      // Predicated region
      $region41: #{bigru_sublayer.1} parent=5 // pred_check
        _
      $region42: #{bigru_sublayer.1} parent=5 // pred_check_branch
        %371 = sbr.rel (%p368) target = $region44
      $region43: #{bigru_sublayer.1} parent=5 // pred_region
        %s372 = ssub.s32 %s20, 1
        %s373 = sand.u32 %s159, 1
        %s374 = scalar_lea.sflag [#allocation5], %s373
        %s375 = sand.u32 %s159, 1
        %s376 = smul.addr %s375, 256
        %s377 = scalar_lea.vmem [#allocation4], %s376
        // Predicated region
        $region45: #{bigru_sublayer.1} parent=43 // pred_check
          %p378 = pneg %p172
        $region46: #{bigru_sublayer.1} parent=43 // pred_check_branch
          %380 = sbr.rel (%p378) target = $region48
        $region47: #{bigru_sublayer.1} parent=43 // pred_region
          %382 = dma.done %s374, 4096
        $region48: #{bigru_sublayer.1} parent=43 // pred_fallthru
          _
        %s383 = sand.u32 %s185, 1
        %s384 = scalar_lea.sflag [#allocation7], %s383
        %s385 = sand.u32 %s185, 1
        %s386 = smul.addr %s385, 128
        %s387 = scalar_lea.vmem [#allocation6], %s386
        // Predicated region
        $region49: #{bigru_sublayer.1} parent=43 // pred_check
          %p388 = pneg %p198
        $region50: #{bigru_sublayer.1} parent=43 // pred_check_branch
          %390 = sbr.rel (%p388) target = $region52
        $region51: #{bigru_sublayer.1} parent=43 // pred_region
          %392 = dma.done %s384, 2048
        $region52: #{bigru_sublayer.1} parent=43 // pred_fallthru
          _
        %s393 = ssub.s32 1, %s29
        %s394 = smul.u32 %s393, %s30
        %s395 = ssub.s32 1, %s30
        %s396 = smul.u32 %s29, %s395
        %s397 = sadd.s32 %s394, %s396
        %s398 = smul.u32 4, %s397
        %p399 = scmp.lt.s32.totalorder %s398, 7
        %s400 = scalar_select %p399, %s398, 7
        %s401 = smul.addr %s400, 8
        %s402 = scalar_lea.vmem %s0, %s401
        %p403 = pneg %p68
        %p404 = pneg %p65
        %p405 = scmp.lt.s32.totalorder %s29, 1
        %s406 = scalar_select %p405, %s29, 1
        %s407 = smul.addr %s406, 8
        %s408 = scalar_lea.vmem %s1, %s407
        %p409 = pneg %p94
        %p410 = pneg %p91
        %p411 = scmp.lt.s32.totalorder %s29, 1
        %s412 = scalar_select %p411, %s29, 1
        %s413 = smul.addr %s412, 6
        %s414 = smul.addr %s413, 8
        %s415 = scalar_lea.vmem %s2, %s414
        %p416 = pneg %p120
        %p417 = pneg %p117
        %p418 = scmp.lt.s32.totalorder %s29, 1
        %s419 = scalar_select %p418, %s29, 1
        %s420 = smul.addr %s419, 3
        %s421 = scalar_lea.vmem %s3, %s420
        %p422 = pneg %p146
        %p423 = pneg %p143
        %s424 = sand.u32 %s159, 1
        %s425 = scalar_lea.sflag [#allocation5], %s424
        %s426 = sand.u32 %s159, 1
        %s427 = smul.addr %s426, 256
        %s428 = scalar_lea.vmem [#allocation4], %s427
        %p429 = pneg %p172
        %p430 = pneg %p169
        %s431 = sand.u32 %s185, 1
        %s432 = scalar_lea.sflag [#allocation7], %s431
        %s433 = sand.u32 %s185, 1
        %s434 = smul.addr %s433, 128
        %s435 = scalar_lea.vmem [#allocation6], %s434
        %p436 = pneg %p198
        %p437 = pneg %p195
        %p438 = pneg %p236
        %p439 = pneg %p233
        %s440 = ssub.s32 1, %s29
        %s441 = smul.u32 %s440, %s30
        %s442 = ssub.s32 1, %s30
        %s443 = smul.u32 %s29, %s442
        %s444 = sadd.s32 %s441, %s443
        %s445 = smul.u32 4, %s444
        %p446 = scmp.lt.s32.totalorder %s29, 1
        %s447 = scalar_select %p446, %s29, 1
        %p448 = scmp.lt.s32.totalorder %s445, 7
        %s449 = scalar_select %p448, %s445, 7
        %s450 = smul.addr %s447, 8
        %s451 = sadd.s32 %s449, %s450
        %s452 = smul.addr %s451, 8
        %s453 = scalar_lea.vmem %s6, %s452
        %p454 = pneg %p262
        %p455 = pneg %p259
        %p456 = scmp.lt.s32.totalorder %s29, 1
        %s457 = scalar_select %p456, %s29, 1
        %s458 = smul.addr %s457, 8
        %s459 = scalar_lea.vmem %s7, %s458
        %s460 = ssub.s32 1, %s29
        %s461 = smul.u32 %s460, %s30
        %s462 = ssub.s32 1, %s30
        %s463 = smul.u32 %s29, %s462
        %s464 = sadd.s32 %s461, %s463
        %s465 = smul.u32 4, %s464
        %p466 = scmp.lt.s32.totalorder %s465, 7
        %s467 = scalar_select %p466, %s465, 7
        %s468 = smul.addr %s467, 8
        %s469 = scalar_lea.vmem %s0, %s468
        %s470 = ssub.s32 1, %s29
        %s471 = smul.u32 %s470, %s30
        %s472 = ssub.s32 1, %s30
        %s473 = smul.u32 %s29, %s472
        %s474 = sadd.s32 %s471, %s473
        %s475 = smul.u32 4, %s474
        %p476 = scmp.lt.s32.totalorder %s29, 1
        %s477 = scalar_select %p476, %s29, 1
        %s478 = smul.addr %s477, 8
        %s479 = scalar_lea.vmem %s1, %s478
        %p480 = scmp.lt.s32.totalorder %s29, 1
        %s481 = scalar_select %p480, %s29, 1
        %s482 = smul.addr %s481, 6
        %s483 = smul.addr %s482, 8
        %s484 = scalar_lea.vmem %s2, %s483
        %p485 = scmp.lt.s32.totalorder %s29, 1
        %s486 = scalar_select %p485, %s29, 1
        %s487 = smul.addr %s486, 3
        %s488 = scalar_lea.vmem %s3, %s487
        %s489 = ssub.s32 1, %s29
        %s490 = smul.u32 %s489, %s30
        %s491 = ssub.s32 1, %s30
        %s492 = smul.u32 %s29, %s491
        %s493 = sadd.s32 %s490, %s492
        %s494 = smul.u32 4, %s493
        %p495 = scmp.lt.s32.totalorder %s29, 1
        %s496 = scalar_select %p495, %s29, 1
        %p497 = scmp.lt.s32.totalorder %s494, 7
        %s498 = scalar_select %p497, %s494, 7
        %s499 = smul.addr %s496, 8
        %s500 = sadd.s32 %s498, %s499
        %s501 = smul.addr %s500, 8
        %s502 = scalar_lea.vmem %s6, %s501
        %s503 = ssub.s32 1, %s29
        %s504 = smul.u32 %s503, %s30
        %s505 = ssub.s32 1, %s30
        %s506 = smul.u32 %s29, %s505
        %s507 = sadd.s32 %s504, %s506
        %s508 = smul.u32 4, %s507
        %p509 = scmp.lt.s32.totalorder %s29, 1
        %s510 = scalar_select %p509, %s29, 1
        %s511 = smul.addr %s510, 8
        %s512 = scalar_lea.vmem %s7, %s511
        %p513 = scmp.eq.s32.totalorder %s30, 0
        // Predicated region
        $region53: #{bigru_sublayer.1} parent=43 // pred_check
          %p514 = pneg %p513
        $region54: #{bigru_sublayer.1} parent=43 // pred_check_branch
          %516 = sbr.rel (%p514) target = $region56
        $region55: #{bigru_sublayer.1} parent=43 // pred_region
          %v517 = vld [vmem:[%s479] sm:$0xff]
          %518 = vst [vmem:[#allocation2] sm:$0xff] %v517
        $region56: #{bigru_sublayer.1} parent=43 // pred_fallthru
          _
        %v519 = vld [vmem:[%s469] sm:$0xff]
        %v520 = vld [vmem:[%s469 + $0x8] sm:$0xff]
        %v521 = vld [vmem:[%s469 + $0x10] sm:$0xff]
        %v522 = vld [vmem:[%s469 + $0x18] sm:$0xff]
        %v523 = vld [vmem:[%s484] sm:$0xff]
        %v524 = vld [vmem:[%s484 + $0x8] sm:$0xff]
        %v525 = vld [vmem:[%s484 + $0x10] sm:$0xff]
        %v526 = vld [vmem:[%s484 + $0x18] sm:$0xff]
        %v527 = vld [vmem:[%s484 + $0x20] sm:$0xff]
        %v528 = vld [vmem:[%s484 + $0x28] sm:$0xff]
        %v529 = vld [vmem:[%s488] sm:$0x7]
        %v531 = vperm.slane %v529, 0
        %v532 = vperm.slane %v529, 1
        %v533 = vperm.slane %v529, 2
        %vm537 = vcmask 130048
        %v539 = vsel %vm537, %v519, 0
        %v542 = vsel %vm537, %v520, 0
        %v545 = vsel %vm537, %v521, 0
        %v548 = vsel %vm537, %v522, 0
        %550 = vmatpush.msra.mxu0 0.0
        %551 = vmatpush.msra.mxu0 0.0
        %552 = vmatpush.msra.mxu0 0.0
        %553 = vmatpush.msra.mxu0 0.0
        %554 = vmatpush.msra.mxu0 0.0
        %555 = vmatpush.msra.mxu0 0.0
        %556 = vmatpush.msra.mxu0 0.0
        %557 = vmatpush.msra.mxu0 0.0
        %558 = vmatpush.msra.mxu0 0.0
        %559 = vmatpush.msra.mxu0 0.0
        %560 = vmatpush.msra.mxu0 0.0
        %561 = vmatpush.msra.mxu0 0.0
        %562 = vmatpush.msra.mxu0 0.0
        %563 = vmatpush.msra.mxu0 0.0
        %564 = vmatpush.msra.mxu0 %v526
        %565 = vmatpush.msra.mxu0 %v523
        %566 = vmatmul.f32.gmra.mxu0 %v539
        %v567 = vpop.f32.mrf.mxu0
        %v568 = vadd.f32 %v531, %v567
        %569 = vmatmul.f32.gmra.mxu0 %v542
        %v570 = vpop.f32.mrf.mxu0
        %v571 = vadd.f32 %v531, %v570
        %572 = vmatmul.f32.gmra.mxu0 %v545
        %v573 = vpop.f32.mrf.mxu0
        %v574 = vadd.f32 %v531, %v573
        %575 = vmatmul.f32.gmra.mxu0 %v548
        %v576 = vpop.f32.mrf.mxu0
        %v577 = vadd.f32 %v531, %v576
        %578 = vdwg.mxu0
        %579 = vmatpush.msra.mxu0 0.0
        %580 = vmatpush.msra.mxu0 0.0
        %581 = vmatpush.msra.mxu0 0.0
        %582 = vmatpush.msra.mxu0 0.0
        %583 = vmatpush.msra.mxu0 0.0
        %584 = vmatpush.msra.mxu0 0.0
        %585 = vmatpush.msra.mxu0 0.0
        %586 = vmatpush.msra.mxu0 0.0
        %587 = vmatpush.msra.mxu0 0.0
        %588 = vmatpush.msra.mxu0 0.0
        %589 = vmatpush.msra.mxu0 0.0
        %590 = vmatpush.msra.mxu0 0.0
        %591 = vmatpush.msra.mxu0 0.0
        %592 = vmatpush.msra.mxu0 0.0
        %593 = vmatpush.msra.mxu0 %v527
        %594 = vmatpush.msra.mxu0 %v524
        %595 = vmatmul.f32.gmra.mxu0 %v539
        %v596 = vpop.f32.mrf.mxu0
        %v597 = vadd.f32 %v532, %v596
        %598 = vmatmul.f32.gmra.mxu0 %v542
        %v599 = vpop.f32.mrf.mxu0
        %v600 = vadd.f32 %v532, %v599
        %601 = vmatmul.f32.gmra.mxu0 %v545
        %v602 = vpop.f32.mrf.mxu0
        %v603 = vadd.f32 %v532, %v602
        %604 = vmatmul.f32.gmra.mxu0 %v548
        %v605 = vpop.f32.mrf.mxu0
        %v606 = vadd.f32 %v532, %v605
        %607 = vdwg.mxu0
        %608 = vmatpush.msra.mxu0 0.0
        %609 = vmatpush.msra.mxu0 0.0
        %610 = vmatpush.msra.mxu0 0.0
        %611 = vmatpush.msra.mxu0 0.0
        %612 = vmatpush.msra.mxu0 0.0
        %613 = vmatpush.msra.mxu0 0.0
        %614 = vmatpush.msra.mxu0 0.0
        %615 = vmatpush.msra.mxu0 0.0
        %616 = vmatpush.msra.mxu0 0.0
        %617 = vmatpush.msra.mxu0 0.0
        %618 = vmatpush.msra.mxu0 0.0
        %619 = vmatpush.msra.mxu0 0.0
        %620 = vmatpush.msra.mxu0 0.0
        %621 = vmatpush.msra.mxu0 0.0
        %622 = vmatpush.msra.mxu0 %v528
        %623 = vmatpush.msra.mxu0 %v525
        %624 = vmatmul.f32.gmra.mxu0 %v539
        %v625 = vpop.f32.mrf.mxu0
        %v626 = vadd.f32 %v533, %v625
        %627 = vmatmul.f32.gmra.mxu0 %v542
        %v628 = vpop.f32.mrf.mxu0
        %v629 = vadd.f32 %v533, %v628
        %630 = vmatmul.f32.gmra.mxu0 %v545
        %v631 = vpop.f32.mrf.mxu0
        %v632 = vadd.f32 %v533, %v631
        %633 = vmatmul.f32.gmra.mxu0 %v548
        %v634 = vpop.f32.mrf.mxu0
        %v635 = vadd.f32 %v533, %v634
        %636 = vdwg.mxu0
        %637 = vst [vmem:[#allocation3] sm:$0xff] %v568
        %638 = vst [vmem:[#allocation3 + $0x8] sm:$0xff] %v597
        %639 = vst [vmem:[#allocation3 + $0x10] sm:$0xff] %v626
        %640 = vst [vmem:[#allocation3 + $0x18] sm:$0xff] %v571
        %641 = vst [vmem:[#allocation3 + $0x20] sm:$0xff] %v600
        %642 = vst [vmem:[#allocation3 + $0x28] sm:$0xff] %v629
        %643 = vst [vmem:[#allocation3 + $0x30] sm:$0xff] %v574
        %644 = vst [vmem:[#allocation3 + $0x38] sm:$0xff] %v603
        %645 = vst [vmem:[#allocation3 + $0x40] sm:$0xff] %v632
        %646 = vst [vmem:[#allocation3 + $0x48] sm:$0xff] %v577
        %647 = vst [vmem:[#allocation3 + $0x50] sm:$0xff] %v606
        %648 = vst [vmem:[#allocation3 + $0x58] sm:$0xff] %v635
        %v649 = vld [vmem:[%s377] sm:$0xff]
        %v650 = vld [vmem:[%s377 + $0x8] sm:$0xff]
        %v651 = vld [vmem:[%s377 + $0x10] sm:$0xff]
        %v652 = vld [vmem:[%s377 + $0x18] sm:$0xff]
        %v653 = vld [vmem:[%s377 + $0x20] sm:$0xff]
        %v654 = vld [vmem:[%s377 + $0x28] sm:$0xff]
        %v655 = vld [vmem:[%s377 + $0x30] sm:$0xff]
        %v656 = vld [vmem:[%s377 + $0x38] sm:$0xff]
        %v657 = vld [vmem:[%s377 + $0x40] sm:$0xff]
        %v658 = vld [vmem:[%s377 + $0x48] sm:$0xff]
        %v659 = vld [vmem:[%s377 + $0x50] sm:$0xff]
        %v660 = vld [vmem:[%s377 + $0x58] sm:$0xff]
        %v661 = vld [vmem:[%s377 + $0x60] sm:$0xff]
        %v662 = vld [vmem:[%s377 + $0x68] sm:$0xff]
        %v663 = vld [vmem:[%s377 + $0x70] sm:$0xff]
        %v664 = vld [vmem:[%s377 + $0x78] sm:$0xff]
        %v665 = vld [vmem:[%s377 + $0x80] sm:$0xff]
        %v666 = vld [vmem:[%s377 + $0x88] sm:$0xff]
        %v667 = vld [vmem:[%s377 + $0x90] sm:$0xff]
        %v668 = vld [vmem:[%s377 + $0x98] sm:$0xff]
        %v669 = vld [vmem:[%s377 + $0xa0] sm:$0xff]
        %v670 = vld [vmem:[%s377 + $0xa8] sm:$0xff]
        %v671 = vld [vmem:[%s377 + $0xb0] sm:$0xff]
        %v672 = vld [vmem:[%s377 + $0xb8] sm:$0xff]
        %v673 = vld [vmem:[%s377 + $0xc0] sm:$0xff]
        %v674 = vld [vmem:[%s377 + $0xc8] sm:$0xff]
        %v675 = vld [vmem:[%s377 + $0xd0] sm:$0xff]
        %v676 = vld [vmem:[%s377 + $0xd8] sm:$0xff]
        %v677 = vld [vmem:[%s377 + $0xe0] sm:$0xff]
        %v678 = vld [vmem:[%s377 + $0xe8] sm:$0xff]
        %v679 = vld [vmem:[%s377 + $0xf0] sm:$0xff]
        %v680 = vld [vmem:[%s377 + $0xf8] sm:$0xff]
        %v681 = vld [vmem:[%s387] sm:$0xff]
        %v682 = vld [vmem:[%s387 + $0x8] sm:$0xff]
        %v683 = vld [vmem:[%s387 + $0x10] sm:$0xff]
        %v684 = vld [vmem:[%s387 + $0x18] sm:$0xff]
        %v685 = vld [vmem:[%s387 + $0x20] sm:$0xff]
        %v686 = vld [vmem:[%s387 + $0x28] sm:$0xff]
        %v687 = vld [vmem:[%s387 + $0x30] sm:$0xff]
        %v688 = vld [vmem:[%s387 + $0x38] sm:$0xff]
        %v689 = vld [vmem:[%s387 + $0x40] sm:$0xff]
        %v690 = vld [vmem:[%s387 + $0x48] sm:$0xff]
        %v691 = vld [vmem:[%s387 + $0x50] sm:$0xff]
        %v692 = vld [vmem:[%s387 + $0x58] sm:$0xff]
        %v693 = vld [vmem:[%s387 + $0x60] sm:$0xff]
        %v694 = vld [vmem:[%s387 + $0x68] sm:$0xff]
        %v695 = vld [vmem:[%s387 + $0x70] sm:$0xff]
        %v696 = vld [vmem:[%s387 + $0x78] sm:$0xff]
        %s697 = smul.u32 %s29, 24
        %s698 = sshra.s32 %s697, 3
        %s699 = sand.u32 %s697, 7
        %s700 = smul.u32 %s698, 3
        %s701 = smul.addr %s700, 8
        %s702 = scalar_lea.vmem [#allocation3], %s701
        %v703 = vld [vmem:[%s702] sm:$0xff]
        %v704 = vld [vmem:[%s702 + $0x8] sm:$0xff]
        %v705 = vld [vmem:[%s702 + $0x10] sm:$0xff]
        %v706 = vld [vmem:[#allocation2] sm:$0xff]
        %707 = vmatpush.msra.mxu0 %v679
        %708 = vmatpush.msra.mxu0 %v677
        %709 = vmatpush.msra.mxu0 %v675
        %710 = vmatpush.msra.mxu0 %v673
        %711 = vmatpush.msra.mxu0 %v671
        %712 = vmatpush.msra.mxu0 %v669
        %713 = vmatpush.msra.mxu0 %v667
        %714 = vmatpush.msra.mxu0 %v665
        %715 = vmatpush.msra.mxu0 %v663
        %716 = vmatpush.msra.mxu0 %v661
        %717 = vmatpush.msra.mxu0 %v659
        %718 = vmatpush.msra.mxu0 %v657
        %719 = vmatpush.msra.mxu0 %v655
        %720 = vmatpush.msra.mxu0 %v653
        %721 = vmatpush.msra.mxu0 %v651
        %722 = vmatpush.msra.mxu0 %v649
        %723 = vmatmul.f32.gmra.mxu0 %v706
        %v724 = vpop.f32.mrf.mxu0
        %v725 = vadd.f32 0.0, %v724
        %726 = vdwg.mxu0
        %727 = vmatpush.msra.mxu0 %v680
        %728 = vmatpush.msra.mxu0 %v678
        %729 = vmatpush.msra.mxu0 %v676
        %730 = vmatpush.msra.mxu0 %v674
        %731 = vmatpush.msra.mxu0 %v672
        %732 = vmatpush.msra.mxu0 %v670
        %733 = vmatpush.msra.mxu0 %v668
        %734 = vmatpush.msra.mxu0 %v666
        %735 = vmatpush.msra.mxu0 %v664
        %736 = vmatpush.msra.mxu0 %v662
        %737 = vmatpush.msra.mxu0 %v660
        %738 = vmatpush.msra.mxu0 %v658
        %739 = vmatpush.msra.mxu0 %v656
        %740 = vmatpush.msra.mxu0 %v654
        %741 = vmatpush.msra.mxu0 %v652
        %742 = vmatpush.msra.mxu0 %v650
        %743 = vmatmul.f32.gmra.mxu0 %v706
        %v744 = vpop.f32.mrf.mxu0
        %v745 = vadd.f32 0.0, %v744
        %746 = vdwg.mxu0
        %v747 = vadd.f32 %v703, %v725
        %v748 = vadd.f32 %v704, %v745
        %v749 = vxor.u32 %v747, 2147483648
        %v750 = vxor.u32 %v748, 2147483648
        %v751 = vmul.f32 %v749, 1.442695
        %v752 = vpow.pop %v751
        %v753 = vmul.f32 %v750, 1.442695
        %v754 = vpow.pop %v753
        %v755 = vadd.f32 %v752, 1.0
        %v756 = vadd.f32 %v754, 1.0
        %v757 = vrcp.pop %v755
        %v758 = vmul.f32 %v755, %v757
        %v759 = vsub.f32 1.0, %v758
        %v760 = vmul.f32 %v757, %v759
        %v761 = vadd.f32 %v757, %v760
        %vm762 = vweird.f32 %v755
        %vm763 = vweird.f32 %v757
        %vm764 = vmor %vm762, %vm763
        %v765 = vsel %vm764, %v757, %v761
        %v766 = vand.u32 2147483647, %v755
        %vm767 = vcmp.eq.f32.partialorder %v766, 8.507059e+37
        %v768 = vand.u32 %v755, 2147483648
        %v769 = vor.u32 1.1754944e-38, %v768
        %v770 = vsel %vm767, %v769, %v765
        %v771 = vmul.f32 1.0, %v770
        %v772 = vrcp.pop %v756
        %v773 = vmul.f32 %v756, %v772
        %v774 = vsub.f32 1.0, %v773
        %v775 = vmul.f32 %v772, %v774
        %v776 = vadd.f32 %v772, %v775
        %vm777 = vweird.f32 %v756
        %vm778 = vweird.f32 %v772
        %vm779 = vmor %vm777, %vm778
        %v780 = vsel %vm779, %v772, %v776
        %v781 = vand.u32 2147483647, %v756
        %vm782 = vcmp.eq.f32.partialorder %v781, 8.507059e+37
        %v783 = vand.u32 %v756, 2147483648
        %v784 = vor.u32 1.1754944e-38, %v783
        %v785 = vsel %vm782, %v784, %v780
        %v786 = vmul.f32 1.0, %v785
        %v787 = vmul.f32 %v786, %v706
        %788 = vmatpush.msra.mxu0 %v696
        %789 = vmatpush.msra.mxu0 %v695
        %790 = vmatpush.msra.mxu0 %v694
        %791 = vmatpush.msra.mxu0 %v693
        %792 = vmatpush.msra.mxu0 %v692
        %793 = vmatpush.msra.mxu0 %v691
        %794 = vmatpush.msra.mxu0 %v690
        %795 = vmatpush.msra.mxu0 %v689
        %796 = vmatpush.msra.mxu0 %v688
        %797 = vmatpush.msra.mxu0 %v687
        %798 = vmatpush.msra.mxu0 %v686
        %799 = vmatpush.msra.mxu0 %v685
        %800 = vmatpush.msra.mxu0 %v684
        %801 = vmatpush.msra.mxu0 %v683
        %802 = vmatpush.msra.mxu0 %v682
        %803 = vmatpush.msra.mxu0 %v681
        %804 = vmatmul.f32.gmra.mxu0 %v787
        %v805 = vpop.f32.mrf.mxu0
        %v806 = vadd.f32 0.0, %v805
        %807 = vdwg.mxu0
        %v808 = vadd.f32 %v705, %v806
        %v809 = vtanh.pop %v808
        %v810 = vsub.f32 1.0, %v771
        %v811 = vmul.f32 %v810, %v706
        %v812 = vmul.f32 %v771, %v809
        %v813 = vadd.f32 %v811, %v812
        %814 = vst [vmem:[#allocation2] sm:$0xff] %v813
        %s815 = scalar_lea.vmem %s502, %s697
        %816 = vst [vmem:[%s815] sm:$0xff] %v813
        %s817 = ssub.s32 1, %s29
        %s818 = smul.u32 %s29, 2
        %s819 = sadd.s32 %s817, %s818
        %s820 = smul.u32 %s819, 8
        %s821 = sshra.s32 %s820, 3
        %s822 = sand.u32 %s820, 7
        %s823 = smul.u32 %s821, 3
        %s824 = smul.addr %s823, 8
        %s825 = scalar_lea.vmem [#allocation3], %s824
        %v826 = vld [vmem:[%s825] sm:$0xff]
        %v827 = vld [vmem:[%s825 + $0x8] sm:$0xff]
        %v828 = vld [vmem:[%s825 + $0x10] sm:$0xff]
        %v829 = vld [vmem:[#allocation2] sm:$0xff]
        %830 = vmatpush.msra.mxu0 %v679
        %831 = vmatpush.msra.mxu0 %v677
        %832 = vmatpush.msra.mxu0 %v675
        %833 = vmatpush.msra.mxu0 %v673
        %834 = vmatpush.msra.mxu0 %v671
        %835 = vmatpush.msra.mxu0 %v669
        %836 = vmatpush.msra.mxu0 %v667
        %837 = vmatpush.msra.mxu0 %v665
        %838 = vmatpush.msra.mxu0 %v663
        %839 = vmatpush.msra.mxu0 %v661
        %840 = vmatpush.msra.mxu0 %v659
        %841 = vmatpush.msra.mxu0 %v657
        %842 = vmatpush.msra.mxu0 %v655
        %843 = vmatpush.msra.mxu0 %v653
        %844 = vmatpush.msra.mxu0 %v651
        %845 = vmatpush.msra.mxu0 %v649
        %846 = vmatmul.f32.gmra.mxu0 %v829
        %v847 = vpop.f32.mrf.mxu0
        %v848 = vadd.f32 0.0, %v847
        %849 = vdwg.mxu0
        %850 = vmatpush.msra.mxu0 %v680
        %851 = vmatpush.msra.mxu0 %v678
        %852 = vmatpush.msra.mxu0 %v676
        %853 = vmatpush.msra.mxu0 %v674
        %854 = vmatpush.msra.mxu0 %v672
        %855 = vmatpush.msra.mxu0 %v670
        %856 = vmatpush.msra.mxu0 %v668
        %857 = vmatpush.msra.mxu0 %v666
        %858 = vmatpush.msra.mxu0 %v664
        %859 = vmatpush.msra.mxu0 %v662
        %860 = vmatpush.msra.mxu0 %v660
        %861 = vmatpush.msra.mxu0 %v658
        %862 = vmatpush.msra.mxu0 %v656
        %863 = vmatpush.msra.mxu0 %v654
        %864 = vmatpush.msra.mxu0 %v652
        %865 = vmatpush.msra.mxu0 %v650
        %866 = vmatmul.f32.gmra.mxu0 %v829
        %v867 = vpop.f32.mrf.mxu0
        %v868 = vadd.f32 0.0, %v867
        %869 = vdwg.mxu0
        %v870 = vadd.f32 %v826, %v848
        %v871 = vadd.f32 %v827, %v868
        %v872 = vxor.u32 %v870, 2147483648
        %v873 = vxor.u32 %v871, 2147483648
        %v874 = vmul.f32 %v872, 1.442695
        %v875 = vpow.pop %v874
        %v876 = vmul.f32 %v873, 1.442695
        %v877 = vpow.pop %v876
        %v878 = vadd.f32 %v875, 1.0
        %v879 = vadd.f32 %v877, 1.0
        %v880 = vrcp.pop %v878
        %v881 = vmul.f32 %v878, %v880
        %v882 = vsub.f32 1.0, %v881
        %v883 = vmul.f32 %v880, %v882
        %v884 = vadd.f32 %v880, %v883
        %vm885 = vweird.f32 %v878
        %vm886 = vweird.f32 %v880
        %vm887 = vmor %vm885, %vm886
        %v888 = vsel %vm887, %v880, %v884
        %v889 = vand.u32 2147483647, %v878
        %vm890 = vcmp.eq.f32.partialorder %v889, 8.507059e+37
        %v891 = vand.u32 %v878, 2147483648
        %v892 = vor.u32 1.1754944e-38, %v891
        %v893 = vsel %vm890, %v892, %v888
        %v894 = vmul.f32 1.0, %v893
        %v895 = vrcp.pop %v879
        %v896 = vmul.f32 %v879, %v895
        %v897 = vsub.f32 1.0, %v896
        %v898 = vmul.f32 %v895, %v897
        %v899 = vadd.f32 %v895, %v898
        %vm900 = vweird.f32 %v879
        %vm901 = vweird.f32 %v895
        %vm902 = vmor %vm900, %vm901
        %v903 = vsel %vm902, %v895, %v899
        %v904 = vand.u32 2147483647, %v879
        %vm905 = vcmp.eq.f32.partialorder %v904, 8.507059e+37
        %v906 = vand.u32 %v879, 2147483648
        %v907 = vor.u32 1.1754944e-38, %v906
        %v908 = vsel %vm905, %v907, %v903
        %v909 = vmul.f32 1.0, %v908
        %v910 = vmul.f32 %v909, %v829
        %911 = vmatpush.msra.mxu0 %v696
        %912 = vmatpush.msra.mxu0 %v695
        %913 = vmatpush.msra.mxu0 %v694
        %914 = vmatpush.msra.mxu0 %v693
        %915 = vmatpush.msra.mxu0 %v692
        %916 = vmatpush.msra.mxu0 %v691
        %917 = vmatpush.msra.mxu0 %v690
        %918 = vmatpush.msra.mxu0 %v689
        %919 = vmatpush.msra.mxu0 %v688
        %920 = vmatpush.msra.mxu0 %v687
        %921 = vmatpush.msra.mxu0 %v686
        %922 = vmatpush.msra.mxu0 %v685
        %923 = vmatpush.msra.mxu0 %v684
        %924 = vmatpush.msra.mxu0 %v683
        %925 = vmatpush.msra.mxu0 %v682
        %926 = vmatpush.msra.mxu0 %v681
        %927 = vmatmul.f32.gmra.mxu0 %v910
        %v928 = vpop.f32.mrf.mxu0
        %v929 = vadd.f32 0.0, %v928
        %930 = vdwg.mxu0
        %v931 = vadd.f32 %v828, %v929
        %v932 = vtanh.pop %v931
        %v933 = vsub.f32 1.0, %v894
        %v934 = vmul.f32 %v933, %v829
        %v935 = vmul.f32 %v894, %v932
        %v936 = vadd.f32 %v934, %v935
        %937 = vst [vmem:[#allocation2] sm:$0xff] %v936
        %s938 = scalar_lea.vmem %s502, %s820
        %939 = vst [vmem:[%s938] sm:$0xff] %v936
        %s940 = smul.u32 %s817, 2
        %s941 = sadd.s32 %s940, %s29
        %s942 = smul.u32 %s941, 8
        %s943 = sshra.s32 %s942, 3
        %s944 = sand.u32 %s942, 7
        %s945 = smul.u32 %s943, 3
        %s946 = smul.addr %s945, 8
        %s947 = scalar_lea.vmem [#allocation3], %s946
        %v948 = vld [vmem:[%s947] sm:$0xff]
        %v949 = vld [vmem:[%s947 + $0x8] sm:$0xff]
        %v950 = vld [vmem:[%s947 + $0x10] sm:$0xff]
        %v951 = vld [vmem:[#allocation2] sm:$0xff]
        %952 = vmatpush.msra.mxu0 %v679
        %953 = vmatpush.msra.mxu0 %v677
        %954 = vmatpush.msra.mxu0 %v675
        %955 = vmatpush.msra.mxu0 %v673
        %956 = vmatpush.msra.mxu0 %v671
        %957 = vmatpush.msra.mxu0 %v669
        %958 = vmatpush.msra.mxu0 %v667
        %959 = vmatpush.msra.mxu0 %v665
        %960 = vmatpush.msra.mxu0 %v663
        %961 = vmatpush.msra.mxu0 %v661
        %962 = vmatpush.msra.mxu0 %v659
        %963 = vmatpush.msra.mxu0 %v657
        %964 = vmatpush.msra.mxu0 %v655
        %965 = vmatpush.msra.mxu0 %v653
        %966 = vmatpush.msra.mxu0 %v651
        %967 = vmatpush.msra.mxu0 %v649
        %968 = vmatmul.f32.gmra.mxu0 %v951
        %v969 = vpop.f32.mrf.mxu0
        %v970 = vadd.f32 0.0, %v969
        %971 = vdwg.mxu0
        %972 = vmatpush.msra.mxu0 %v680
        %973 = vmatpush.msra.mxu0 %v678
        %974 = vmatpush.msra.mxu0 %v676
        %975 = vmatpush.msra.mxu0 %v674
        %976 = vmatpush.msra.mxu0 %v672
        %977 = vmatpush.msra.mxu0 %v670
        %978 = vmatpush.msra.mxu0 %v668
        %979 = vmatpush.msra.mxu0 %v666
        %980 = vmatpush.msra.mxu0 %v664
        %981 = vmatpush.msra.mxu0 %v662
        %982 = vmatpush.msra.mxu0 %v660
        %983 = vmatpush.msra.mxu0 %v658
        %984 = vmatpush.msra.mxu0 %v656
        %985 = vmatpush.msra.mxu0 %v654
        %986 = vmatpush.msra.mxu0 %v652
        %987 = vmatpush.msra.mxu0 %v650
        %988 = vmatmul.f32.gmra.mxu0 %v951
        %v989 = vpop.f32.mrf.mxu0
        %v990 = vadd.f32 0.0, %v989
        %991 = vdwg.mxu0
        %v992 = vadd.f32 %v948, %v970
        %v993 = vadd.f32 %v949, %v990
        %v994 = vxor.u32 %v992, 2147483648
        %v995 = vxor.u32 %v993, 2147483648
        %v996 = vmul.f32 %v994, 1.442695
        %v997 = vpow.pop %v996
        %v998 = vmul.f32 %v995, 1.442695
        %v999 = vpow.pop %v998
        %v1000 = vadd.f32 %v997, 1.0
        %v1001 = vadd.f32 %v999, 1.0
        %v1002 = vrcp.pop %v1000
        %v1003 = vmul.f32 %v1000, %v1002
        %v1004 = vsub.f32 1.0, %v1003
        %v1005 = vmul.f32 %v1002, %v1004
        %v1006 = vadd.f32 %v1002, %v1005
        %vm1007 = vweird.f32 %v1000
        %vm1008 = vweird.f32 %v1002
        %vm1009 = vmor %vm1007, %vm1008
        %v1010 = vsel %vm1009, %v1002, %v1006
        %v1011 = vand.u32 2147483647, %v1000
        %vm1012 = vcmp.eq.f32.partialorder %v1011, 8.507059e+37
        %v1013 = vand.u32 %v1000, 2147483648
        %v1014 = vor.u32 1.1754944e-38, %v1013
        %v1015 = vsel %vm1012, %v1014, %v1010
        %v1016 = vmul.f32 1.0, %v1015
        %v1017 = vrcp.pop %v1001
        %v1018 = vmul.f32 %v1001, %v1017
        %v1019 = vsub.f32 1.0, %v1018
        %v1020 = vmul.f32 %v1017, %v1019
        %v1021 = vadd.f32 %v1017, %v1020
        %vm1022 = vweird.f32 %v1001
        %vm1023 = vweird.f32 %v1017
        %vm1024 = vmor %vm1022, %vm1023
        %v1025 = vsel %vm1024, %v1017, %v1021
        %v1026 = vand.u32 2147483647, %v1001
        %vm1027 = vcmp.eq.f32.partialorder %v1026, 8.507059e+37
        %v1028 = vand.u32 %v1001, 2147483648
        %v1029 = vor.u32 1.1754944e-38, %v1028
        %v1030 = vsel %vm1027, %v1029, %v1025
        %v1031 = vmul.f32 1.0, %v1030
        %v1032 = vmul.f32 %v1031, %v951
        %1033 = vmatpush.msra.mxu0 %v696
        %1034 = vmatpush.msra.mxu0 %v695
        %1035 = vmatpush.msra.mxu0 %v694
        %1036 = vmatpush.msra.mxu0 %v693
        %1037 = vmatpush.msra.mxu0 %v692
        %1038 = vmatpush.msra.mxu0 %v691
        %1039 = vmatpush.msra.mxu0 %v690
        %1040 = vmatpush.msra.mxu0 %v689
        %1041 = vmatpush.msra.mxu0 %v688
        %1042 = vmatpush.msra.mxu0 %v687
        %1043 = vmatpush.msra.mxu0 %v686
        %1044 = vmatpush.msra.mxu0 %v685
        %1045 = vmatpush.msra.mxu0 %v684
        %1046 = vmatpush.msra.mxu0 %v683
        %1047 = vmatpush.msra.mxu0 %v682
        %1048 = vmatpush.msra.mxu0 %v681
        %1049 = vmatmul.f32.gmra.mxu0 %v1032
        %v1050 = vpop.f32.mrf.mxu0
        %v1051 = vadd.f32 0.0, %v1050
        %1052 = vdwg.mxu0
        %v1053 = vadd.f32 %v950, %v1051
        %v1054 = vtanh.pop %v1053
        %v1055 = vsub.f32 1.0, %v1016
        %v1056 = vmul.f32 %v1055, %v951
        %v1057 = vmul.f32 %v1016, %v1054
        %v1058 = vadd.f32 %v1056, %v1057
        %1059 = vst [vmem:[#allocation2] sm:$0xff] %v1058
        %s1060 = scalar_lea.vmem %s502, %s942
        %1061 = vst [vmem:[%s1060] sm:$0xff] %v1058
        %s1062 = smul.u32 %s817, 24
        %s1063 = sshra.s32 %s1062, 3
        %s1064 = sand.u32 %s1062, 7
        %s1065 = smul.u32 %s1063, 3
        %s1066 = smul.addr %s1065, 8
        %s1067 = scalar_lea.vmem [#allocation3], %s1066
        %v1068 = vld [vmem:[%s1067] sm:$0xff]
        %v1069 = vld [vmem:[%s1067 + $0x8] sm:$0xff]
        %v1070 = vld [vmem:[%s1067 + $0x10] sm:$0xff]
        %v1071 = vld [vmem:[#allocation2] sm:$0xff]
        %1072 = vmatpush.msra.mxu0 %v679
        %1073 = vmatpush.msra.mxu0 %v677
        %1074 = vmatpush.msra.mxu0 %v675
        %1075 = vmatpush.msra.mxu0 %v673
        %1076 = vmatpush.msra.mxu0 %v671
        %1077 = vmatpush.msra.mxu0 %v669
        %1078 = vmatpush.msra.mxu0 %v667
        %1079 = vmatpush.msra.mxu0 %v665
        %1080 = vmatpush.msra.mxu0 %v663
        %1081 = vmatpush.msra.mxu0 %v661
        %1082 = vmatpush.msra.mxu0 %v659
        %1083 = vmatpush.msra.mxu0 %v657
        %1084 = vmatpush.msra.mxu0 %v655
        %1085 = vmatpush.msra.mxu0 %v653
        %1086 = vmatpush.msra.mxu0 %v651
        %1087 = vmatpush.msra.mxu0 %v649
        %1088 = vmatmul.f32.gmra.mxu0 %v1071
        %v1089 = vpop.f32.mrf.mxu0
        %v1090 = vadd.f32 0.0, %v1089
        %1091 = vdwg.mxu0
        %1092 = vmatpush.msra.mxu0 %v680
        %1093 = vmatpush.msra.mxu0 %v678
        %1094 = vmatpush.msra.mxu0 %v676
        %1095 = vmatpush.msra.mxu0 %v674
        %1096 = vmatpush.msra.mxu0 %v672
        %1097 = vmatpush.msra.mxu0 %v670
        %1098 = vmatpush.msra.mxu0 %v668
        %1099 = vmatpush.msra.mxu0 %v666
        %1100 = vmatpush.msra.mxu0 %v664
        %1101 = vmatpush.msra.mxu0 %v662
        %1102 = vmatpush.msra.mxu0 %v660
        %1103 = vmatpush.msra.mxu0 %v658
        %1104 = vmatpush.msra.mxu0 %v656
        %1105 = vmatpush.msra.mxu0 %v654
        %1106 = vmatpush.msra.mxu0 %v652
        %1107 = vmatpush.msra.mxu0 %v650
        %1108 = vmatmul.f32.gmra.mxu0 %v1071
        %v1109 = vpop.f32.mrf.mxu0
        %v1110 = vadd.f32 0.0, %v1109
        %1111 = vdwg.mxu0
        %v1112 = vadd.f32 %v1068, %v1090
        %v1113 = vadd.f32 %v1069, %v1110
        %v1114 = vxor.u32 %v1112, 2147483648
        %v1115 = vxor.u32 %v1113, 2147483648
        %v1116 = vmul.f32 %v1114, 1.442695
        %v1117 = vpow.pop %v1116
        %v1118 = vmul.f32 %v1115, 1.442695
        %v1119 = vpow.pop %v1118
        %v1120 = vadd.f32 %v1117, 1.0
        %v1121 = vadd.f32 %v1119, 1.0
        %v1122 = vrcp.pop %v1120
        %v1123 = vmul.f32 %v1120, %v1122
        %v1124 = vsub.f32 1.0, %v1123
        %v1125 = vmul.f32 %v1122, %v1124
        %v1126 = vadd.f32 %v1122, %v1125
        %vm1127 = vweird.f32 %v1120
        %vm1128 = vweird.f32 %v1122
        %vm1129 = vmor %vm1127, %vm1128
        %v1130 = vsel %vm1129, %v1122, %v1126
        %v1131 = vand.u32 2147483647, %v1120
        %vm1132 = vcmp.eq.f32.partialorder %v1131, 8.507059e+37
        %v1133 = vand.u32 %v1120, 2147483648
        %v1134 = vor.u32 1.1754944e-38, %v1133
        %v1135 = vsel %vm1132, %v1134, %v1130
        %v1136 = vmul.f32 1.0, %v1135
        %v1137 = vrcp.pop %v1121
        %v1138 = vmul.f32 %v1121, %v1137
        %v1139 = vsub.f32 1.0, %v1138
        %v1140 = vmul.f32 %v1137, %v1139
        %v1141 = vadd.f32 %v1137, %v1140
        %vm1142 = vweird.f32 %v1121
        %vm1143 = vweird.f32 %v1137
        %vm1144 = vmor %vm1142, %vm1143
        %v1145 = vsel %vm1144, %v1137, %v1141
        %v1146 = vand.u32 2147483647, %v1121
        %vm1147 = vcmp.eq.f32.partialorder %v1146, 8.507059e+37
        %v1148 = vand.u32 %v1121, 2147483648
        %v1149 = vor.u32 1.1754944e-38, %v1148
        %v1150 = vsel %vm1147, %v1149, %v1145
        %v1151 = vmul.f32 1.0, %v1150
        %v1152 = vmul.f32 %v1151, %v1071
        %1153 = vmatpush.msra.mxu0 %v696
        %1154 = vmatpush.msra.mxu0 %v695
        %1155 = vmatpush.msra.mxu0 %v694
        %1156 = vmatpush.msra.mxu0 %v693
        %1157 = vmatpush.msra.mxu0 %v692
        %1158 = vmatpush.msra.mxu0 %v691
        %1159 = vmatpush.msra.mxu0 %v690
        %1160 = vmatpush.msra.mxu0 %v689
        %1161 = vmatpush.msra.mxu0 %v688
        %1162 = vmatpush.msra.mxu0 %v687
        %1163 = vmatpush.msra.mxu0 %v686
        %1164 = vmatpush.msra.mxu0 %v685
        %1165 = vmatpush.msra.mxu0 %v684
        %1166 = vmatpush.msra.mxu0 %v683
        %1167 = vmatpush.msra.mxu0 %v682
        %1168 = vmatpush.msra.mxu0 %v681
        %1169 = vmatmul.f32.gmra.mxu0 %v1152
        %v1170 = vpop.f32.mrf.mxu0
        %v1171 = vadd.f32 0.0, %v1170
        %1172 = vdwg.mxu0
        %v1173 = vadd.f32 %v1070, %v1171
        %v1174 = vtanh.pop %v1173
        %v1175 = vsub.f32 1.0, %v1136
        %v1176 = vmul.f32 %v1175, %v1071
        %v1177 = vmul.f32 %v1136, %v1174
        %v1178 = vadd.f32 %v1176, %v1177
        %1179 = vst [vmem:[#allocation2] sm:$0xff] %v1178
        %s1180 = scalar_lea.vmem %s502, %s1062
        %1181 = vst [vmem:[%s1180] sm:$0xff] %v1178
        %p1182 = scmp.eq.s32.totalorder %s30, 1
        // Predicated region
        $region57: #{bigru_sublayer.1} parent=43 // pred_check
          %p1183 = pneg %p1182
        $region58: #{bigru_sublayer.1} parent=43 // pred_check_branch
          %1185 = sbr.rel (%p1183) target = $region60
        $region59: #{bigru_sublayer.1} parent=43 // pred_region
          %v1186 = vld [vmem:[#allocation2] sm:$0xff]
          %1187 = vst [vmem:[%s512] sm:$0xff] %v1186
        $region60: #{bigru_sublayer.1} parent=43 // pred_fallthru
          _
        %s1188 = ssub.s32 1, %s29
        %s1189 = smul.u32 %s1188, %s30
        %s1190 = ssub.s32 1, %s30
        %s1191 = smul.u32 %s29, %s1190
        %s1192 = sadd.s32 %s1189, %s1191
        %s1193 = smul.u32 4, %s1192
        %p1194 = scmp.lt.s32.totalorder %s29, 1
        %s1195 = scalar_select %p1194, %s29, 1
        %p1196 = scmp.lt.s32.totalorder %s1193, 7
        %s1197 = scalar_select %p1196, %s1193, 7
        %s1198 = smul.addr %s1195, 8
        %s1199 = sadd.s32 %s1197, %s1198
        %s1200 = smul.addr %s1199, 8
        %s1201 = scalar_lea.vmem %s6, %s1200
        %p1202 = scmp.lt.s32.totalorder %s29, 1
        %s1203 = scalar_select %p1202, %s29, 1
        %s1204 = smul.addr %s1203, 8
        %s1205 = scalar_lea.vmem %s7, %s1204
        // Predicated region
        $region61: #{bigru_sublayer.1} parent=43 // pred_check
          %p1206 = pneg %p233
        $region62: #{bigru_sublayer.1} parent=43 // pred_check_branch
          %1208 = sbr.rel (%p1206) target = $region64
        $region63: #{bigru_sublayer.1} parent=43 // pred_region
          %s1209 = ssub.s32 1, %s29
          %s1210 = smul.u32 %s1209, %s30
          %s1211 = ssub.s32 1, %s30
          %s1212 = smul.u32 %s29, %s1211
          %s1213 = sadd.s32 %s1210, %s1212
          %s1214 = smul.u32 4, %s1213
        $region64: #{bigru_sublayer.1} parent=43 // pred_fallthru
          _
        // Predicated region
        $region65: #{bigru_sublayer.1} parent=43 // pred_check
          %p1215 = pneg %p259
        $region66: #{bigru_sublayer.1} parent=43 // pred_check_branch
          %1217 = sbr.rel (%p1215) target = $region68
        $region67: #{bigru_sublayer.1} parent=43 // pred_region
          _
        $region68: #{bigru_sublayer.1} parent=43 // pred_fallthru
          _
      $region44: #{bigru_sublayer.1} parent=5 // pred_fallthru
        _
      %p1218 = scmp.le.s32.totalorder 2, %s20
      // Predicated region
      $region69: #{bigru_sublayer.1} parent=5 // pred_check
        %p1219 = pneg %p1218
      $region70: #{bigru_sublayer.1} parent=5 // pred_check_branch
        %1221 = sbr.rel (%p1219) target = $region72
      $region71: #{bigru_sublayer.1} parent=5 // pred_region
        %s1222 = ssub.s32 %s20, 2
        // Predicated region
        $region73: #{bigru_sublayer.1} parent=71 // pred_check
          %p1223 = pneg %p239
        $region74: #{bigru_sublayer.1} parent=71 // pred_check_branch
          %1225 = sbr.rel (%p1223) target = $region76
        $region75: #{bigru_sublayer.1} parent=71 // pred_region
          %s1226 = ssub.s32 1, %s31
          %s1227 = smul.u32 %s1226, %s32
          %s1228 = ssub.s32 1, %s32
          %s1229 = smul.u32 %s31, %s1228
          %s1230 = sadd.s32 %s1227, %s1229
          %s1231 = smul.u32 4, %s1230
          %p1232 = scmp.lt.s32.totalorder %s31, 1
          %s1233 = scalar_select %p1232, %s31, 1
          %p1234 = scmp.lt.s32.totalorder %s1231, 7
          %s1235 = scalar_select %p1234, %s1231, 7
          %s1236 = smul.addr %s1233, 8
          %s1237 = sadd.s32 %s1235, %s1236
          %s1238 = smul.addr %s1237, 8
          %s1239 = scalar_lea.vmem %s6, %s1238
        $region76: #{bigru_sublayer.1} parent=71 // pred_fallthru
          _
        // Predicated region
        $region77: #{bigru_sublayer.1} parent=71 // pred_check
          %p1240 = pneg %p265
        $region78: #{bigru_sublayer.1} parent=71 // pred_check_branch
          %1242 = sbr.rel (%p1240) target = $region80
        $region79: #{bigru_sublayer.1} parent=71 // pred_region
          %p1243 = scmp.lt.s32.totalorder %s31, 1
          %s1244 = scalar_select %p1243, %s31, 1
          %s1245 = smul.addr %s1244, 8
          %s1246 = scalar_lea.vmem %s7, %s1245
        $region80: #{bigru_sublayer.1} parent=71 // pred_fallthru
          _
      $region72: #{bigru_sublayer.1} parent=5 // pred_fallthru
        _
    $region6: #{bigru_sublayer.1} parent=1 // loop_footer
      %s24 = sadd.s32 1, %s20
    $region7: #{bigru_sublayer.1} parent=1 // loop_footer_branch
      %19 = sbr.rel target = $region3
    $region8: #{bigru_sublayer.1} parent=1 // loop_exit
      _
    %1247 = vsyncpa [#allocation5], 1
    %s1248 = scalar_lea.sflag [#allocation5], 1
    %1249 = vsyncpa %s1248, 1
    %1250 = vsyncpa [#allocation7], 1
    %s1251 = scalar_lea.sflag [#allocation7], 1
    %1252 = vsyncpa %s1251, 1

</llo_original>
